<compile_context>
chip_gen: v7x
topology: tpu7x:2x2x1
jax: 0.10.0
libtpu: 0.0.40
codegen_flags: <defaults>
</compile_context>

<pallas_src>
import jax
import jax.numpy as jnp
from jax.experimental import pallas as pl
from jax.experimental.pallas import tpu as pltpu

# ----- model hyper-parameters (small, consistent with the reference module) -----
N_HEADS = 1
D_K = D_V = 16
D_MODEL = 32          # data.nodes * 2  (nodes = 16 in this synthetic setup)
D_FF = 256
EPS = 1e-5


# ---------------------------------------------------------------------------
# Kernel
# ---------------------------------------------------------------------------
def _layernorm(y):
    # nn.LayerNorm(d_model) freshly constructed each forward: weight=1, bias=0.
    mu = jnp.mean(y, axis=-1, keepdims=True)
    var = jnp.mean((y - mu) ** 2, axis=-1, keepdims=True)
    return (y - mu) * jax.lax.rsqrt(var + EPS)


def _attention(q, k, v, link, mask, sim_w, sim_b):
    # scores = Q K^T / sqrt(d_k) + (w*link + b), masked_fill(-1e9), softmax
    scores = jax.lax.dot_general(
        q, k, (((1,), (1,)), ((), ())),
        preferred_element_type=jnp.float32) * jnp.float32(D_K ** -0.5)
    scores = scores + (sim_w * link + sim_b)
    scores = jnp.where(mask > 0.5, jnp.float32(-1e9), scores)
    m = jnp.max(scores, axis=-1, keepdims=True)
    e = jnp.exp(scores - m)
    attn = e * pl.reciprocal(jnp.sum(e, axis=-1, keepdims=True), approx=True)
    ctx = jnp.dot(attn, v, preferred_element_type=jnp.float32)
    return ctx, attn


def decoder_layer_kernel(dec_ref, enc_ref, smask_ref, emask_ref, link_ref,
                         wqkv1_ref, wfc1_ref, wq2_ref, wkv2_ref, wfc2_ref,
                         wff1_ref, wff2_ref, sim_ref,
                         out_ref, attn_ref):
    x = dec_ref[0]        # (L, D)
    enc = enc_ref[0]      # (L, D)
    link = link_ref[0]    # (L, L)

    # ---- stage 1: masked decoder self-attention (Q = K = V = dec_inputs) ----
    qkv = jnp.dot(x, wqkv1_ref[...], preferred_element_type=jnp.float32)   # (L, 3*d_k)
    ctx1, attn1 = _attention(qkv[:, :D_K], qkv[:, D_K:2 * D_K], qkv[:, 2 * D_K:],
                             link, smask_ref[0], sim_ref[0], sim_ref[1])
    y1 = _layernorm(
        jnp.dot(ctx1, wfc1_ref[...], preferred_element_type=jnp.float32) + x)

    # ---- stage 2: decoder-encoder attention (Q from y1, K = V = enc_outputs) ----
    q2 = jnp.dot(y1, wq2_ref[...], preferred_element_type=jnp.float32)     # (L, d_k)
    kv2 = jnp.dot(enc, wkv2_ref[...], preferred_element_type=jnp.float32)  # (L, 2*d_k)
    ctx2, attn2 = _attention(q2, kv2[:, :D_K], kv2[:, D_K:],
                             link, emask_ref[0], sim_ref[2], sim_ref[3])
    y2 = _layernorm(
        jnp.dot(ctx2, wfc2_ref[...], preferred_element_type=jnp.float32) + y1)

    # ---- stage 3: position-wise feed-forward ----
    h = jnp.maximum(
        jnp.dot(y2, wff1_ref[...], preferred_element_type=jnp.float32), 0.0)
    y3 = _layernorm(
        jnp.dot(h, wff2_ref[...], preferred_element_type=jnp.float32) + y2)

    out_ref[0] = y3
    attn_ref[0, 0] = attn1
    attn_ref[0, 1] = attn2


# ---------------------------------------------------------------------------
# Wrapper
# ---------------------------------------------------------------------------
def decoder_layer(dec_inputs, enc_outputs, dec_self_attn_mask, dec_enc_attn_mask,
                  link_sim_mat, params):
    """Fused DecoderLayer forward.

    Returns (dec_out [B,L,D], dec_self_attn [B,1,L,L], dec_enc_attn [B,1,L,L]).
    """
    B, L, D = dec_inputs.shape

    vmem = pl.BlockSpec(memory_space=pltpu.MemorySpace.VMEM)   # resident weights
    smem = pl.BlockSpec(memory_space=pltpu.MemorySpace.SMEM)   # conv scalars
    per_batch_ld = pl.BlockSpec((1, L, D), lambda b: (b, 0, 0))
    per_batch_ll = pl.BlockSpec((1, L, L), lambda b: (b, 0, 0))

    dec_out, attn = pl.pallas_call(
        decoder_layer_kernel,
        out_shape=(jax.ShapeDtypeStruct((B, L, D), jnp.float32),
                   jax.ShapeDtypeStruct((B, 2, L, L), jnp.float32)),
        grid=(B,),
        in_specs=[
            per_batch_ld,            # dec_inputs
            per_batch_ld,            # enc_outputs
            per_batch_ll,            # dec_self_attn_mask
            per_batch_ll,            # dec_enc_attn_mask
            per_batch_ll,            # link_sim_mat
            vmem,                    # self W_Q|W_K|W_V   (D, 3*d_k)
            vmem,                    # self fc            (d_v, D)
            vmem,                    # enc  W_Q           (D, d_k)
            vmem,                    # enc  W_K|W_V       (D, 2*d_k)
            vmem,                    # enc  fc            (d_v, D)
            vmem,                    # ffn  W1            (D, d_ff)
            vmem,                    # ffn  W2            (d_ff, D)
            smem,                    # [self_conv_w, self_conv_b, enc_conv_w, enc_conv_b]
        ],
        out_specs=(per_batch_ld,
                   pl.BlockSpec((1, 2, L, L), lambda b: (b, 0, 0, 0))),
        compiler_params=pltpu.CompilerParams(dimension_semantics=("parallel",)),
    )(dec_inputs, enc_outputs, dec_self_attn_mask, dec_enc_attn_mask, link_sim_mat,
      params["self_wqkv"], params["self_wfc"],
      params["enc_wq"], params["enc_wkv"], params["enc_wfc"],
      params["ffn_w1"], params["ffn_w2"], params["sim"])

    # split the packed attention stream into the two [B, n_heads=1, L, L] maps
    return dec_out, attn[:, 0:1], attn[:, 1:2]


# ---------------------------------------------------------------------------
# Parameter init (deterministic, PyTorch Linear-style fan-in scaling,
# weights stored pre-transposed so y = x @ W)
# ---------------------------------------------------------------------------
def init_params(key):
    def lin(k, fan_in, fan_out):
        bound = 1.0 / jnp.sqrt(jnp.float32(fan_in))
        return jax.random.uniform(k, (fan_in, fan_out), jnp.float32, -bound, bound)

    keys = jax.random.split(key, 12)
    params = {
        # self-attention: W_Q | W_K | W_V concatenated along the output axis
        "self_wqkv": jnp.concatenate(
            [lin(keys[0], D_MODEL, D_K * N_HEADS),
             lin(keys[1], D_MODEL, D_K * N_HEADS),
             lin(keys[2], D_MODEL, D_V * N_HEADS)], axis=1),
        "self_wfc": lin(keys[3], N_HEADS * D_V, D_MODEL),
        # enc-dec attention: W_Q separate (different input), W_K | W_V concatenated
        "enc_wq": lin(keys[5], D_MODEL, D_K * N_HEADS),
        "enc_wkv": jnp.concatenate(
            [lin(keys[6], D_MODEL, D_K * N_HEADS),
             lin(keys[7], D_MODEL, D_V * N_HEADS)], axis=1),
        "enc_wfc": lin(keys[8], N_HEADS * D_V, D_MODEL),
        "ffn_w1": lin(keys[10], D_MODEL, D_FF),
        "ffn_w2": lin(keys[11], D_FF, D_MODEL),
        # 1x1 conv scalars: [self_conv_w, self_conv_b, enc_conv_w, enc_conv_b]
        "sim": jnp.concatenate([
            jax.random.uniform(keys[4], (2,), jnp.float32, -1.0, 1.0),
            jax.random.uniform(keys[9], (2,), jnp.float32, -1.0, 1.0)]),
    }
    return params


# ---------------------------------------------------------------------------
if __name__ == "__main__":
    B, L = 2, 8   # batch, sequence length (dec and enc sequences share length so the
                  # same link_sim_mat is added in both attention blocks, as in the ref)

    root = jax.random.PRNGKey(0)
    k_in, k_enc, k_link, k_par = jax.random.split(root, 4)

    dec_inputs = jax.random.normal(k_in, (B, L, D_MODEL), jnp.float32)
    enc_outputs = jax.random.normal(k_enc, (B, L, D_MODEL), jnp.float32)
    link_sim_mat = jax.random.normal(k_link, (B, L, L), jnp.float32)

    # causal mask for decoder self-attention (1.0 = masked), zero mask for enc-dec attn
    causal = jnp.triu(jnp.ones((L, L), jnp.float32), k=1)
    dec_self_attn_mask = jnp.broadcast_to(causal, (B, L, L))
    dec_enc_attn_mask = jnp.zeros((B, L, L), jnp.float32)

    params = init_params(k_par)

    dec_out, self_attn, enc_attn = decoder_layer(
        dec_inputs, enc_outputs, dec_self_attn_mask, dec_enc_attn_mask,
        link_sim_mat, params)

    jax.block_until_ready((dec_out, self_attn, enc_attn))
    assert dec_out.shape == (B, L, D_MODEL)
    assert self_attn.shape == (B, N_HEADS, L, L)
    assert enc_attn.shape == (B, N_HEADS, L, L)
    assert bool(jnp.all(jnp.isfinite(dec_out)))
    print("KERNEL_OK")
</pallas_src>

<mosaic_0001>
module attributes {stable_mosaic.version = 11 : i64} {
  func.func @decoder_layer_kernel(%arg0: i32, %arg1: memref<1x8x32xf32, #tpu.memory_space<vmem>>, %arg2: memref<1x8x32xf32, #tpu.memory_space<vmem>>, %arg3: memref<1x8x8xf32, #tpu.memory_space<vmem>>, %arg4: memref<1x8x8xf32, #tpu.memory_space<vmem>>, %arg5: memref<1x8x8xf32, #tpu.memory_space<vmem>>, %arg6: memref<32x48xf32, #tpu.memory_space<vmem>>, %arg7: memref<16x32xf32, #tpu.memory_space<vmem>>, %arg8: memref<32x16xf32, #tpu.memory_space<vmem>>, %arg9: memref<32x32xf32, #tpu.memory_space<vmem>>, %arg10: memref<16x32xf32, #tpu.memory_space<vmem>>, %arg11: memref<32x256xf32, #tpu.memory_space<vmem>>, %arg12: memref<256x32xf32, #tpu.memory_space<vmem>>, %arg13: memref<4xf32, #tpu.memory_space<smem>>, %arg14: memref<1x8x32xf32, #tpu.memory_space<vmem>>, %arg15: memref<1x2x8x8xf32, #tpu.memory_space<vmem>>) attributes {dimension_semantics = [#tpu.dimension_semantics<parallel>], iteration_bounds = array<i64: 2>, scalar_prefetch = 0 : i64, scratch_operands = 0 : i64, tpu.core_type = #tpu.core_type<tc>, window_params = [{transform_indices = @transform_0, window_bounds = array<i64: 1, 8, 32>}, {transform_indices = @transform_1, window_bounds = array<i64: 1, 8, 32>}, {transform_indices = @transform_2, window_bounds = array<i64: 1, 8, 8>}, {transform_indices = @transform_3, window_bounds = array<i64: 1, 8, 8>}, {transform_indices = @transform_4, window_bounds = array<i64: 1, 8, 8>}, {pipeline_mode = #tpu.pipeline_mode<synchronous>, transform_indices = @transform_5, window_bounds = array<i64: 32, 48>}, {pipeline_mode = #tpu.pipeline_mode<synchronous>, transform_indices = @transform_6, window_bounds = array<i64: 16, 32>}, {pipeline_mode = #tpu.pipeline_mode<synchronous>, transform_indices = @transform_7, window_bounds = array<i64: 32, 16>}, {pipeline_mode = #tpu.pipeline_mode<synchronous>, transform_indices = @transform_8, window_bounds = array<i64: 32, 32>}, {pipeline_mode = #tpu.pipeline_mode<synchronous>, transform_indices = @transform_9, window_bounds = array<i64: 16, 32>}, {pipeline_mode = #tpu.pipeline_mode<synchronous>, transform_indices = @transform_10, window_bounds = array<i64: 32, 256>}, {pipeline_mode = #tpu.pipeline_mode<synchronous>, transform_indices = @transform_11, window_bounds = array<i64: 256, 32>}, {transform_indices = @transform_12, window_bounds = array<i64: 4>}, {transform_indices = @transform_13, window_bounds = array<i64: 1, 8, 32>}, {transform_indices = @transform_14, window_bounds = array<i64: 1, 2, 8, 8>}]} {
    %c0 = arith.constant 0 : index
    %c0_0 = arith.constant 0 : index
    %c0_1 = arith.constant 0 : index
    %0 = vector.load %arg1[%c0, %c0_0, %c0_1] : memref<1x8x32xf32, #tpu.memory_space<vmem>>, vector<1x8x32xf32>
    %1 = vector.shape_cast %0 : vector<1x8x32xf32> to vector<8x32xf32>
    %c0_2 = arith.constant 0 : index
    %c0_3 = arith.constant 0 : index
    %c0_4 = arith.constant 0 : index
    %2 = vector.load %arg2[%c0_2, %c0_3, %c0_4] : memref<1x8x32xf32, #tpu.memory_space<vmem>>, vector<1x8x32xf32>
    %3 = vector.shape_cast %2 : vector<1x8x32xf32> to vector<8x32xf32>
    %c0_5 = arith.constant 0 : index
    %c0_6 = arith.constant 0 : index
    %c0_7 = arith.constant 0 : index
    %4 = vector.load %arg5[%c0_5, %c0_6, %c0_7] : memref<1x8x8xf32, #tpu.memory_space<vmem>>, vector<1x8x8xf32>
    %5 = vector.shape_cast %4 : vector<1x8x8xf32> to vector<8x8xf32>
    %c0_8 = arith.constant 0 : index
    %c0_9 = arith.constant 0 : index
    %6 = vector.load %arg6[%c0_8, %c0_9] : memref<32x48xf32, #tpu.memory_space<vmem>>, vector<32x48xf32>
    %cst = arith.constant dense<0.000000e+00> : vector<8x48xf32>
    %7 = tpu.matmul %1, %6, %cst {dimension_numbers = #tpu.dot_dimension_numbers<[1], [0], [0], [1], [0, 0, 1, 1], [], []>} : vector<8x32xf32>, vector<32x48xf32>, vector<8x48xf32> -> vector<8x48xf32>
    %8 = vector.extract_strided_slice %7 {offsets = [0, 0], sizes = [8, 16], strides = [1, 1]} : vector<8x48xf32> to vector<8x16xf32>
    %9 = vector.extract_strided_slice %7 {offsets = [0, 16], sizes = [8, 16], strides = [1, 1]} : vector<8x48xf32> to vector<8x16xf32>
    %10 = vector.extract_strided_slice %7 {offsets = [0, 32], sizes = [8, 16], strides = [1, 1]} : vector<8x48xf32> to vector<8x16xf32>
    %c0_10 = arith.constant 0 : index
    %c0_11 = arith.constant 0 : index
    %c0_12 = arith.constant 0 : index
    %11 = vector.load %arg3[%c0_10, %c0_11, %c0_12] : memref<1x8x8xf32, #tpu.memory_space<vmem>>, vector<1x8x8xf32>
    %12 = vector.shape_cast %11 : vector<1x8x8xf32> to vector<8x8xf32>
    %c0_13 = arith.constant 0 : index
    %13 = memref.load %arg13[%c0_13] : memref<4xf32, #tpu.memory_space<smem>>
    %c1 = arith.constant 1 : index
    %14 = memref.load %arg13[%c1] : memref<4xf32, #tpu.memory_space<smem>>
    %cst_14 = arith.constant dense<0.000000e+00> : vector<8x8xf32>
    %15 = tpu.matmul %8, %9, %cst_14 {dimension_numbers = #tpu.dot_dimension_numbers<[1], [1], [0], [0], [0, 0, 1, 0], [], []>} : vector<8x16xf32>, vector<8x16xf32>, vector<8x8xf32> -> vector<8x8xf32>
    %cst_15 = arith.constant 2.500000e-01 : f32
    %16 = vector.broadcast %cst_15 : f32 to vector<8x8xf32>
    %17 = arith.mulf %15, %16 : vector<8x8xf32>
    %18 = vector.broadcast %13 : f32 to vector<8x8xf32>
    %19 = arith.mulf %18, %5 : vector<8x8xf32>
    %20 = vector.broadcast %14 : f32 to vector<8x8xf32>
    %21 = arith.addf %19, %20 : vector<8x8xf32>
    %22 = arith.addf %17, %21 : vector<8x8xf32>
    %cst_16 = arith.constant 5.000000e-01 : f32
    %23 = vector.broadcast %cst_16 : f32 to vector<8x8xf32>
    %24 = arith.cmpf ogt, %12, %23 : vector<8x8xf32>
    %cst_17 = arith.constant -1.000000e+09 : f32
    %25 = vector.broadcast %cst_17 : f32 to vector<8x8xf32>
    %26 = arith.select %24, %25, %22 : vector<8x8xi1>, vector<8x8xf32>
    %cst_18 = arith.constant dense<0xFF800000> : vector<8xf32>
    %27 = vector.multi_reduction <maximumf>, %26, %cst_18 [1] : vector<8x8xf32> to vector<8xf32>
    %28 = vector.shape_cast %27 : vector<8xf32> to vector<8x1xf32>
    %29 = vector.broadcast %28 : vector<8x1xf32> to vector<8x8xf32>
    %30 = arith.subf %26, %29 : vector<8x8xf32>
    %31 = math.exp %30 : vector<8x8xf32>
    %cst_19 = arith.constant dense<0.000000e+00> : vector<8xf32>
    %32 = vector.multi_reduction <add>, %31, %cst_19 [1] : vector<8x8xf32> to vector<8xf32>
    %33 = vector.shape_cast %32 : vector<8xf32> to vector<8x1xf32>
    %34 = tpu.reciprocal %33 {approx = true} : vector<8x1xf32> -> vector<8x1xf32>
    %35 = vector.broadcast %34 : vector<8x1xf32> to vector<8x8xf32>
    %36 = arith.mulf %31, %35 : vector<8x8xf32>
    %cst_20 = arith.constant dense<0.000000e+00> : vector<8x16xf32>
    %37 = tpu.matmul %36, %10, %cst_20 {dimension_numbers = #tpu.dot_dimension_numbers<[1], [0], [0], [1], [0, 0, 1, 1], [], []>} : vector<8x8xf32>, vector<8x16xf32>, vector<8x16xf32> -> vector<8x16xf32>
    %c0_21 = arith.constant 0 : index
    %c0_22 = arith.constant 0 : index
    %38 = vector.load %arg7[%c0_21, %c0_22] : memref<16x32xf32, #tpu.memory_space<vmem>>, vector<16x32xf32>
    %cst_23 = arith.constant dense<0.000000e+00> : vector<8x32xf32>
    %39 = tpu.matmul %37, %38, %cst_23 {dimension_numbers = #tpu.dot_dimension_numbers<[1], [0], [0], [1], [0, 0, 1, 1], [], []>} : vector<8x16xf32>, vector<16x32xf32>, vector<8x32xf32> -> vector<8x32xf32>
    %40 = arith.addf %39, %1 : vector<8x32xf32>
    %cst_24 = arith.constant dense<0.000000e+00> : vector<8xf32>
    %41 = vector.multi_reduction <add>, %40, %cst_24 [1] : vector<8x32xf32> to vector<8xf32>
    %42 = vector.shape_cast %41 : vector<8xf32> to vector<8x1xf32>
    %cst_25 = arith.constant 3.200000e+01 : f32
    %43 = vector.broadcast %cst_25 : f32 to vector<8x1xf32>
    %44 = arith.divf %42, %43 : vector<8x1xf32>
    %45 = vector.broadcast %44 : vector<8x1xf32> to vector<8x32xf32>
    %46 = arith.subf %40, %45 : vector<8x32xf32>
    %47 = arith.mulf %46, %46 : vector<8x32xf32>
    %cst_26 = arith.constant dense<0.000000e+00> : vector<8xf32>
    %48 = vector.multi_reduction <add>, %47, %cst_26 [1] : vector<8x32xf32> to vector<8xf32>
    %49 = vector.shape_cast %48 : vector<8xf32> to vector<8x1xf32>
    %cst_27 = arith.constant 3.200000e+01 : f32
    %50 = vector.broadcast %cst_27 : f32 to vector<8x1xf32>
    %51 = arith.divf %49, %50 : vector<8x1xf32>
    %52 = vector.broadcast %44 : vector<8x1xf32> to vector<8x32xf32>
    %53 = arith.subf %40, %52 : vector<8x32xf32>
    %cst_28 = arith.constant 9.99999974E-6 : f32
    %54 = vector.broadcast %cst_28 : f32 to vector<8x1xf32>
    %55 = arith.addf %51, %54 : vector<8x1xf32>
    %56 = math.rsqrt %55 : vector<8x1xf32>
    %57 = vector.broadcast %56 : vector<8x1xf32> to vector<8x32xf32>
    %58 = arith.mulf %53, %57 : vector<8x32xf32>
    %c0_29 = arith.constant 0 : index
    %c0_30 = arith.constant 0 : index
    %59 = vector.load %arg8[%c0_29, %c0_30] : memref<32x16xf32, #tpu.memory_space<vmem>>, vector<32x16xf32>
    %cst_31 = arith.constant dense<0.000000e+00> : vector<8x16xf32>
    %60 = tpu.matmul %58, %59, %cst_31 {dimension_numbers = #tpu.dot_dimension_numbers<[1], [0], [0], [1], [0, 0, 1, 1], [], []>} : vector<8x32xf32>, vector<32x16xf32>, vector<8x16xf32> -> vector<8x16xf32>
    %c0_32 = arith.constant 0 : index
    %c0_33 = arith.constant 0 : index
    %61 = vector.load %arg9[%c0_32, %c0_33] : memref<32x32xf32, #tpu.memory_space<vmem>>, vector<32x32xf32>
    %cst_34 = arith.constant dense<0.000000e+00> : vector<8x32xf32>
    %62 = tpu.matmul %3, %61, %cst_34 {dimension_numbers = #tpu.dot_dimension_numbers<[1], [0], [0], [1], [0, 0, 1, 1], [], []>} : vector<8x32xf32>, vector<32x32xf32>, vector<8x32xf32> -> vector<8x32xf32>
    %63 = vector.extract_strided_slice %62 {offsets = [0, 0], sizes = [8, 16], strides = [1, 1]} : vector<8x32xf32> to vector<8x16xf32>
    %64 = vector.extract_strided_slice %62 {offsets = [0, 16], sizes = [8, 16], strides = [1, 1]} : vector<8x32xf32> to vector<8x16xf32>
    %c0_35 = arith.constant 0 : index
    %c0_36 = arith.constant 0 : index
    %c0_37 = arith.constant 0 : index
    %65 = vector.load %arg4[%c0_35, %c0_36, %c0_37] : memref<1x8x8xf32, #tpu.memory_space<vmem>>, vector<1x8x8xf32>
    %66 = vector.shape_cast %65 : vector<1x8x8xf32> to vector<8x8xf32>
    %c2 = arith.constant 2 : index
    %67 = memref.load %arg13[%c2] : memref<4xf32, #tpu.memory_space<smem>>
    %c3 = arith.constant 3 : index
    %68 = memref.load %arg13[%c3] : memref<4xf32, #tpu.memory_space<smem>>
    %cst_38 = arith.constant dense<0.000000e+00> : vector<8x8xf32>
    %69 = tpu.matmul %60, %63, %cst_38 {dimension_numbers = #tpu.dot_dimension_numbers<[1], [1], [0], [0], [0, 0, 1, 0], [], []>} : vector<8x16xf32>, vector<8x16xf32>, vector<8x8xf32> -> vector<8x8xf32>
    %cst_39 = arith.constant 2.500000e-01 : f32
    %70 = vector.broadcast %cst_39 : f32 to vector<8x8xf32>
    %71 = arith.mulf %69, %70 : vector<8x8xf32>
    %72 = vector.broadcast %67 : f32 to vector<8x8xf32>
    %73 = arith.mulf %72, %5 : vector<8x8xf32>
    %74 = vector.broadcast %68 : f32 to vector<8x8xf32>
    %75 = arith.addf %73, %74 : vector<8x8xf32>
    %76 = arith.addf %71, %75 : vector<8x8xf32>
    %cst_40 = arith.constant 5.000000e-01 : f32
    %77 = vector.broadcast %cst_40 : f32 to vector<8x8xf32>
    %78 = arith.cmpf ogt, %66, %77 : vector<8x8xf32>
    %cst_41 = arith.constant -1.000000e+09 : f32
    %79 = vector.broadcast %cst_41 : f32 to vector<8x8xf32>
    %80 = arith.select %78, %79, %76 : vector<8x8xi1>, vector<8x8xf32>
    %cst_42 = arith.constant dense<0xFF800000> : vector<8xf32>
    %81 = vector.multi_reduction <maximumf>, %80, %cst_42 [1] : vector<8x8xf32> to vector<8xf32>
    %82 = vector.shape_cast %81 : vector<8xf32> to vector<8x1xf32>
    %83 = vector.broadcast %82 : vector<8x1xf32> to vector<8x8xf32>
    %84 = arith.subf %80, %83 : vector<8x8xf32>
    %85 = math.exp %84 : vector<8x8xf32>
    %cst_43 = arith.constant dense<0.000000e+00> : vector<8xf32>
    %86 = vector.multi_reduction <add>, %85, %cst_43 [1] : vector<8x8xf32> to vector<8xf32>
    %87 = vector.shape_cast %86 : vector<8xf32> to vector<8x1xf32>
    %88 = tpu.reciprocal %87 {approx = true} : vector<8x1xf32> -> vector<8x1xf32>
    %89 = vector.broadcast %88 : vector<8x1xf32> to vector<8x8xf32>
    %90 = arith.mulf %85, %89 : vector<8x8xf32>
    %cst_44 = arith.constant dense<0.000000e+00> : vector<8x16xf32>
    %91 = tpu.matmul %90, %64, %cst_44 {dimension_numbers = #tpu.dot_dimension_numbers<[1], [0], [0], [1], [0, 0, 1, 1], [], []>} : vector<8x8xf32>, vector<8x16xf32>, vector<8x16xf32> -> vector<8x16xf32>
    %c0_45 = arith.constant 0 : index
    %c0_46 = arith.constant 0 : index
    %92 = vector.load %arg10[%c0_45, %c0_46] : memref<16x32xf32, #tpu.memory_space<vmem>>, vector<16x32xf32>
    %cst_47 = arith.constant dense<0.000000e+00> : vector<8x32xf32>
    %93 = tpu.matmul %91, %92, %cst_47 {dimension_numbers = #tpu.dot_dimension_numbers<[1], [0], [0], [1], [0, 0, 1, 1], [], []>} : vector<8x16xf32>, vector<16x32xf32>, vector<8x32xf32> -> vector<8x32xf32>
    %94 = arith.addf %93, %58 : vector<8x32xf32>
    %cst_48 = arith.constant dense<0.000000e+00> : vector<8xf32>
    %95 = vector.multi_reduction <add>, %94, %cst_48 [1] : vector<8x32xf32> to vector<8xf32>
    %96 = vector.shape_cast %95 : vector<8xf32> to vector<8x1xf32>
    %cst_49 = arith.constant 3.200000e+01 : f32
    %97 = vector.broadcast %cst_49 : f32 to vector<8x1xf32>
    %98 = arith.divf %96, %97 : vector<8x1xf32>
    %99 = vector.broadcast %98 : vector<8x1xf32> to vector<8x32xf32>
    %100 = arith.subf %94, %99 : vector<8x32xf32>
    %101 = arith.mulf %100, %100 : vector<8x32xf32>
    %cst_50 = arith.constant dense<0.000000e+00> : vector<8xf32>
    %102 = vector.multi_reduction <add>, %101, %cst_50 [1] : vector<8x32xf32> to vector<8xf32>
    %103 = vector.shape_cast %102 : vector<8xf32> to vector<8x1xf32>
    %cst_51 = arith.constant 3.200000e+01 : f32
    %104 = vector.broadcast %cst_51 : f32 to vector<8x1xf32>
    %105 = arith.divf %103, %104 : vector<8x1xf32>
    %106 = vector.broadcast %98 : vector<8x1xf32> to vector<8x32xf32>
    %107 = arith.subf %94, %106 : vector<8x32xf32>
    %cst_52 = arith.constant 9.99999974E-6 : f32
    %108 = vector.broadcast %cst_52 : f32 to vector<8x1xf32>
    %109 = arith.addf %105, %108 : vector<8x1xf32>
    %110 = math.rsqrt %109 : vector<8x1xf32>
    %111 = vector.broadcast %110 : vector<8x1xf32> to vector<8x32xf32>
    %112 = arith.mulf %107, %111 : vector<8x32xf32>
    %c0_53 = arith.constant 0 : index
    %c0_54 = arith.constant 0 : index
    %113 = vector.load %arg11[%c0_53, %c0_54] : memref<32x256xf32, #tpu.memory_space<vmem>>, vector<32x256xf32>
    %cst_55 = arith.constant dense<0.000000e+00> : vector<8x256xf32>
    %114 = tpu.matmul %112, %113, %cst_55 {dimension_numbers = #tpu.dot_dimension_numbers<[1], [0], [0], [1], [0, 0, 1, 1], [], []>} : vector<8x32xf32>, vector<32x256xf32>, vector<8x256xf32> -> vector<8x256xf32>
    %cst_56 = arith.constant 0.000000e+00 : f32
    %115 = vector.broadcast %cst_56 : f32 to vector<8x256xf32>
    %116 = arith.maximumf %114, %115 : vector<8x256xf32>
    %c0_57 = arith.constant 0 : index
    %c0_58 = arith.constant 0 : index
    %117 = vector.load %arg12[%c0_57, %c0_58] : memref<256x32xf32, #tpu.memory_space<vmem>>, vector<256x32xf32>
    %cst_59 = arith.constant dense<0.000000e+00> : vector<8x32xf32>
    %118 = tpu.matmul %116, %117, %cst_59 {dimension_numbers = #tpu.dot_dimension_numbers<[1], [0], [0], [1], [0, 0, 1, 1], [], []>} : vector<8x256xf32>, vector<256x32xf32>, vector<8x32xf32> -> vector<8x32xf32>
    %119 = arith.addf %118, %112 : vector<8x32xf32>
    %cst_60 = arith.constant dense<0.000000e+00> : vector<8xf32>
    %120 = vector.multi_reduction <add>, %119, %cst_60 [1] : vector<8x32xf32> to vector<8xf32>
    %121 = vector.shape_cast %120 : vector<8xf32> to vector<8x1xf32>
    %cst_61 = arith.constant 3.200000e+01 : f32
    %122 = vector.broadcast %cst_61 : f32 to vector<8x1xf32>
    %123 = arith.divf %121, %122 : vector<8x1xf32>
    %124 = vector.broadcast %123 : vector<8x1xf32> to vector<8x32xf32>
    %125 = arith.subf %119, %124 : vector<8x32xf32>
    %126 = arith.mulf %125, %125 : vector<8x32xf32>
    %cst_62 = arith.constant dense<0.000000e+00> : vector<8xf32>
    %127 = vector.multi_reduction <add>, %126, %cst_62 [1] : vector<8x32xf32> to vector<8xf32>
    %128 = vector.shape_cast %127 : vector<8xf32> to vector<8x1xf32>
    %cst_63 = arith.constant 3.200000e+01 : f32
    %129 = vector.broadcast %cst_63 : f32 to vector<8x1xf32>
    %130 = arith.divf %128, %129 : vector<8x1xf32>
    %131 = vector.broadcast %123 : vector<8x1xf32> to vector<8x32xf32>
    %132 = arith.subf %119, %131 : vector<8x32xf32>
    %cst_64 = arith.constant 9.99999974E-6 : f32
    %133 = vector.broadcast %cst_64 : f32 to vector<8x1xf32>
    %134 = arith.addf %130, %133 : vector<8x1xf32>
    %135 = math.rsqrt %134 : vector<8x1xf32>
    %136 = vector.broadcast %135 : vector<8x1xf32> to vector<8x32xf32>
    %137 = arith.mulf %132, %136 : vector<8x32xf32>
    %c0_65 = arith.constant 0 : index
    %c0_66 = arith.constant 0 : index
    %c0_67 = arith.constant 0 : index
    %138 = vector.load %arg14[%c0_65, %c0_66, %c0_67] : memref<1x8x32xf32, #tpu.memory_space<vmem>>, vector<1x8x32xf32>
    %139 = vector.shape_cast %138 : vector<1x8x32xf32> to vector<8x32xf32>
    %140 = vector.shape_cast %137 : vector<8x32xf32> to vector<1x8x32xf32>
    tpu.vector_store %arg14[%c0_65, %c0_66, %c0_67], %140 {strides = array<i32>} : memref<1x8x32xf32, #tpu.memory_space<vmem>>, vector<1x8x32xf32>,
    %c0_68 = arith.constant 0 : index
    %c0_69 = arith.constant 0 : index
    %c0_70 = arith.constant 0 : index
    %c0_71 = arith.constant 0 : index
    %141 = vector.load %arg15[%c0_68, %c0_69, %c0_70, %c0_71] : memref<1x2x8x8xf32, #tpu.memory_space<vmem>>, vector<1x1x8x8xf32>
    %142 = vector.shape_cast %141 : vector<1x1x8x8xf32> to vector<8x8xf32>
    %143 = vector.shape_cast %36 : vector<8x8xf32> to vector<1x1x8x8xf32>
    tpu.vector_store %arg15[%c0_68, %c0_69, %c0_70, %c0_71], %143 {strides = array<i32>} : memref<1x2x8x8xf32, #tpu.memory_space<vmem>>, vector<1x1x8x8xf32>,
    %c0_72 = arith.constant 0 : index
    %c1_73 = arith.constant 1 : index
    %c0_74 = arith.constant 0 : index
    %c0_75 = arith.constant 0 : index
    %144 = vector.load %arg15[%c0_72, %c1_73, %c0_74, %c0_75] : memref<1x2x8x8xf32, #tpu.memory_space<vmem>>, vector<1x1x8x8xf32>
    %145 = vector.shape_cast %144 : vector<1x1x8x8xf32> to vector<8x8xf32>
    %146 = vector.shape_cast %90 : vector<8x8xf32> to vector<1x1x8x8xf32>
    tpu.vector_store %arg15[%c0_72, %c1_73, %c0_74, %c0_75], %146 {strides = array<i32>} : memref<1x2x8x8xf32, #tpu.memory_space<vmem>>, vector<1x1x8x8xf32>,
    return
  }
  func.func @transform_0(%arg0: i32) -> (i32, i32, i32) {
    %c0_i32 = arith.constant 0 : i32
    %c0_i32_0 = arith.constant 0 : i32
    %c0_i32_1 = arith.constant 0 : i32
    return %arg0, %c0_i32, %c0_i32_0 : i32, i32, i32
  }
  func.func @transform_1(%arg0: i32) -> (i32, i32, i32) {
    %c0_i32 = arith.constant 0 : i32
    %c0_i32_0 = arith.constant 0 : i32
    %c0_i32_1 = arith.constant 0 : i32
    return %arg0, %c0_i32, %c0_i32_0 : i32, i32, i32
  }
  func.func @transform_2(%arg0: i32) -> (i32, i32, i32) {
    %c0_i32 = arith.constant 0 : i32
    %c0_i32_0 = arith.constant 0 : i32
    %c0_i32_1 = arith.constant 0 : i32
    return %arg0, %c0_i32, %c0_i32_0 : i32, i32, i32
  }
  func.func @transform_3(%arg0: i32) -> (i32, i32, i32) {
    %c0_i32 = arith.constant 0 : i32
    %c0_i32_0 = arith.constant 0 : i32
    %c0_i32_1 = arith.constant 0 : i32
    return %arg0, %c0_i32, %c0_i32_0 : i32, i32, i32
  }
  func.func @transform_4(%arg0: i32) -> (i32, i32, i32) {
    %c0_i32 = arith.constant 0 : i32
    %c0_i32_0 = arith.constant 0 : i32
    %c0_i32_1 = arith.constant 0 : i32
    return %arg0, %c0_i32, %c0_i32_0 : i32, i32, i32
  }
  func.func @transform_5(%arg0: i32) -> (i32, i32) {
    %c0_i32 = arith.constant 0 : i32
    %c0_i32_0 = arith.constant 0 : i32
    %c0_i32_1 = arith.constant 0 : i32
    return %c0_i32, %c0_i32_0 : i32, i32
  }
  func.func @transform_6(%arg0: i32) -> (i32, i32) {
    %c0_i32 = arith.constant 0 : i32
    %c0_i32_0 = arith.constant 0 : i32
    %c0_i32_1 = arith.constant 0 : i32
    return %c0_i32, %c0_i32_0 : i32, i32
  }
  func.func @transform_7(%arg0: i32) -> (i32, i32) {
    %c0_i32 = arith.constant 0 : i32
    %c0_i32_0 = arith.constant 0 : i32
    %c0_i32_1 = arith.constant 0 : i32
    return %c0_i32, %c0_i32_0 : i32, i32
  }
  func.func @transform_8(%arg0: i32) -> (i32, i32) {
    %c0_i32 = arith.constant 0 : i32
    %c0_i32_0 = arith.constant 0 : i32
    %c0_i32_1 = arith.constant 0 : i32
    return %c0_i32, %c0_i32_0 : i32, i32
  }
  func.func @transform_9(%arg0: i32) -> (i32, i32) {
    %c0_i32 = arith.constant 0 : i32
    %c0_i32_0 = arith.constant 0 : i32
    %c0_i32_1 = arith.constant 0 : i32
    return %c0_i32, %c0_i32_0 : i32, i32
  }
  func.func @transform_10(%arg0: i32) -> (i32, i32) {
    %c0_i32 = arith.constant 0 : i32
    %c0_i32_0 = arith.constant 0 : i32
    %c0_i32_1 = arith.constant 0 : i32
    return %c0_i32, %c0_i32_0 : i32, i32
  }
  func.func @transform_11(%arg0: i32) -> (i32, i32) {
    %c0_i32 = arith.constant 0 : i32
    %c0_i32_0 = arith.constant 0 : i32
    %c0_i32_1 = arith.constant 0 : i32
    return %c0_i32, %c0_i32_0 : i32, i32
  }
  func.func @transform_12(%arg0: i32) -> i32 {
    %c0_i32 = arith.constant 0 : i32
    %c0_i32_0 = arith.constant 0 : i32
    return %c0_i32 : i32
  }
  func.func @transform_13(%arg0: i32) -> (i32, i32, i32) {
    %c0_i32 = arith.constant 0 : i32
    %c0_i32_0 = arith.constant 0 : i32
    %c0_i32_1 = arith.constant 0 : i32
    return %arg0, %c0_i32, %c0_i32_0 : i32, i32, i32
  }
  func.func @transform_14(%arg0: i32) -> (i32, i32, i32, i32) {
    %c0_i32 = arith.constant 0 : i32
    %c0_i32_0 = arith.constant 0 : i32
    %c0_i32_1 = arith.constant 0 : i32
    %c0_i32_2 = arith.constant 0 : i32
    return %arg0, %c0_i32, %c0_i32_0, %c0_i32_1 : i32, i32, i32, i32
  }
}

</mosaic_0001>

<llo_original>
// kernel: tpu_custom_call.1
$region0: #{tpu_custom_call.1}
  #allocation0 [shape = 'u32[]', space=smem, size = 0x4, offset = 0x4, fixed_abs, tag = 'smem constant byte address 0x4 - core index']
  #allocation1 [shape = 'u32[144,128]{1,0:T(1,128)}', space=vmem, size = 0x12000, scoped, tag = 'internal scratch']
  %s0 = inlined_call_operand.vmem [shape: f32[2,8,32], index: 0, kind: input, shape index: {}]
  %s1 = inlined_call_operand.vmem [shape: f32[2,8,32], index: 1, kind: input, shape index: {}]
  %s2 = inlined_call_operand.vmem [shape: f32[2,8,8], index: 2, kind: input, shape index: {}]
  %s3 = inlined_call_operand.vmem [shape: f32[2,8,8], index: 3, kind: input, shape index: {}]
  %s4 = inlined_call_operand.vmem [shape: f32[2,8,8], index: 4, kind: input, shape index: {}]
  %s5 = inlined_call_operand.vmem [shape: f32[32,48], index: 5, kind: input, shape index: {}]
  %s6 = inlined_call_operand.vmem [shape: f32[16,32], index: 6, kind: input, shape index: {}]
  %s7 = inlined_call_operand.vmem [shape: f32[32,16], index: 7, kind: input, shape index: {}]
  %s8 = inlined_call_operand.vmem [shape: f32[32,32], index: 8, kind: input, shape index: {}]
  %s9 = inlined_call_operand.vmem [shape: f32[16,32], index: 9, kind: input, shape index: {}]
  %s10 = inlined_call_operand.vmem [shape: f32[32,256], index: 10, kind: input, shape index: {}]
  %s11 = inlined_call_operand.vmem [shape: f32[256,32], index: 11, kind: input, shape index: {}]
  %s12 = inlined_call_operand.vmem [shape: f32[4], index: 12, kind: input, shape index: {}]
  %s13 = inlined_call_operand.hbm [shape: f32[2,8,32], index: 13, kind: output, shape index: {0}]
  %s14 = inlined_call_operand.hbm [shape: f32[2,2,8,8], index: 14, kind: output, shape index: {1}]
  %15 = xla_tuple %s13, %s14
  %s16 = sld [smem:[#allocation0]]
  $region97: #{tpu_custom_call.1} parent=0
    _
  %s18 = ssub.s32 1, %s16
  %s19 = scalar_select 0, %s18, %s16
  $region1: #{tpu_custom_call.1} parent=0
    #allocation2 [shape = 'u8[512]{0}', space=smem, size = 0x200, scoped, tag = 'input window, operand 12, single buffered']
    #allocation3 [shape = 's32[2]{0}', space=sflag, size = 0x8, scoped, tag = 'scoped memory for tpu_custom_call.1']
    #allocation4 [shape = 's32[2]{0}', space=sflag, size = 0x8, scoped, tag = 'scoped memory for tpu_custom_call.1']
    #allocation5 [shape = 'u8[8192]{0}', space=vmem, size = 0x2000, scoped, tag = 'output window, operand 0']
    #allocation6 [shape = 'u8[16384]{0}', space=vmem, size = 0x4000, scoped, tag = 'output window, operand 1']
    #allocation7 [shape = 's32[2]{0}', space=sflag, size = 0x8, scoped, tag = 'scoped memory for tpu_custom_call.1']
    %20 = vsyncpa [#allocation4], 0
    %21 = vsyncpa [#allocation3], 0
    %s22 = scalar_lea.sflag [#allocation3], 1
    %23 = vsyncpa %s22, 0
    %24 = vsyncpa [#allocation7], 0
    %s25 = scalar_lea.sflag [#allocation7], 1
    %26 = vsyncpa %s25, 0
    loop: start=0, step=1, limit=4
    $region2: #{tpu_custom_call.1} parent=1 // loop_pre_header
      _
    $region3: #{tpu_custom_call.1} parent=1 // loop_header
      %s28 = sphi 0, %s32
      %p29 = scmp.ge.s32.totalorder %s28, 4
      %s38 = sphi 0, %s40
      %s41 = sphi 0, %s38
      %s42 = sphi 0, %s41
      %s58 = sphi 0, %s42
      %s64 = sphi 0, %s66
      %s67 = sphi 0, %s64
      %s68 = sphi 0, %s67
      %s84 = sphi 0, %s68
      %s90 = sphi 0, %s92
      %s93 = sphi 0, %s90
      %s94 = sphi 0, %s93
      %s110 = sphi 0, %s94
      %s116 = sphi 0, %s118
      %s119 = sphi 0, %s116
      %s120 = sphi 0, %s119
      %s136 = sphi 0, %s120
      %s142 = sphi 0, %s144
      %s145 = sphi 0, %s142
      %s146 = sphi 0, %s145
      %s162 = sphi 0, %s146
      %s166 = sphi 0, %s166
      %s168 = sphi 0, %s166
      %s169 = sphi 0, %s168
      %s183 = sphi 0, %s169
      %s187 = sphi 0, %s187
      %s189 = sphi 0, %s187
      %s190 = sphi 0, %s189
      %s204 = sphi 0, %s190
      %s208 = sphi 0, %s208
      %s210 = sphi 0, %s208
      %s211 = sphi 0, %s210
      %s225 = sphi 0, %s211
      %s229 = sphi 0, %s229
      %s231 = sphi 0, %s229
      %s232 = sphi 0, %s231
      %s246 = sphi 0, %s232
      %s250 = sphi 0, %s250
      %s252 = sphi 0, %s250
      %s253 = sphi 0, %s252
      %s267 = sphi 0, %s253
      %s271 = sphi 0, %s271
      %s273 = sphi 0, %s271
      %s274 = sphi 0, %s273
      %s288 = sphi 0, %s274
      %s292 = sphi 0, %s292
      %s294 = sphi 0, %s292
      %s295 = sphi 0, %s294
      %s309 = sphi 0, %s295
      %s313 = sphi 0, %s313
      %s315 = sphi 0, %s313
      %s316 = sphi 0, %s315
      %s330 = sphi 0, %s316
      %s336 = sphi 0, %s338
      %s339 = sphi 0, %s336
      %s340 = sphi 0, %s339
      %s356 = sphi 0, %s340
      %s362 = sphi 0, %s364
      %s365 = sphi 0, %s362
      %s366 = sphi 0, %s365
      %s382 = sphi 0, %s366
    $region4: #{tpu_custom_call.1} parent=1 // loop_header_branch
      %31 = sbr.rel (%p29) target = $region8
    $region5: #{tpu_custom_call.1} parent=1 // loop_body
      %s33 = ssub.s32 %s28, 1
      %s34 = ssub.s32 %s28, 2
      %s35 = sadd.s32 %s28, 1
      %s36 = ssub.s32 %s28, %s35
      %p37 = scmp.eq.s32.totalorder %s36, 0
      %s39 = sadd.s32 %s38, 1
      %s40 = scalar_select %p37, %s38, %s39
      %p43 = pneg %p37
      %p44 = scmp.eq.s32.totalorder %s28, 1
      %p45 = por %p43, %p44
      %p46 = scmp.ne.s32.totalorder %s38, %s41
      %p47 = scmp.eq.s32.totalorder %s28, 0
      %p48 = por %p46, %p47
      %p49 = scmp.ne.s32.totalorder %s38, %s41
      %p50 = scmp.eq.s32.totalorder %s33, 1
      %p51 = por %p49, %p50
      %p52 = scmp.ne.s32.totalorder %s41, %s42
      %p53 = scmp.eq.s32.totalorder %s33, 0
      %p54 = por %p52, %p53
      %p55 = scmp.ne.s32.totalorder %s41, %s42
      %p56 = scmp.eq.s32.totalorder %s34, 1
      %p57 = por %p55, %p56
      %p59 = scmp.ne.s32.totalorder %s42, %s58
      %p60 = scmp.eq.s32.totalorder %s34, 0
      %p61 = por %p59, %p60
      %s62 = ssub.s32 %s28, %s35
      %p63 = scmp.eq.s32.totalorder %s62, 0
      %s65 = sadd.s32 %s64, 1
      %s66 = scalar_select %p63, %s64, %s65
      %p69 = pneg %p63
      %p70 = scmp.eq.s32.totalorder %s28, 1
      %p71 = por %p69, %p70
      %p72 = scmp.ne.s32.totalorder %s64, %s67
      %p73 = scmp.eq.s32.totalorder %s28, 0
      %p74 = por %p72, %p73
      %p75 = scmp.ne.s32.totalorder %s64, %s67
      %p76 = scmp.eq.s32.totalorder %s33, 1
      %p77 = por %p75, %p76
      %p78 = scmp.ne.s32.totalorder %s67, %s68
      %p79 = scmp.eq.s32.totalorder %s33, 0
      %p80 = por %p78, %p79
      %p81 = scmp.ne.s32.totalorder %s67, %s68
      %p82 = scmp.eq.s32.totalorder %s34, 1
      %p83 = por %p81, %p82
      %p85 = scmp.ne.s32.totalorder %s68, %s84
      %p86 = scmp.eq.s32.totalorder %s34, 0
      %p87 = por %p85, %p86
      %s88 = ssub.s32 %s28, %s35
      %p89 = scmp.eq.s32.totalorder %s88, 0
      %s91 = sadd.s32 %s90, 1
      %s92 = scalar_select %p89, %s90, %s91
      %p95 = pneg %p89
      %p96 = scmp.eq.s32.totalorder %s28, 1
      %p97 = por %p95, %p96
      %p98 = scmp.ne.s32.totalorder %s90, %s93
      %p99 = scmp.eq.s32.totalorder %s28, 0
      %p100 = por %p98, %p99
      %p101 = scmp.ne.s32.totalorder %s90, %s93
      %p102 = scmp.eq.s32.totalorder %s33, 1
      %p103 = por %p101, %p102
      %p104 = scmp.ne.s32.totalorder %s93, %s94
      %p105 = scmp.eq.s32.totalorder %s33, 0
      %p106 = por %p104, %p105
      %p107 = scmp.ne.s32.totalorder %s93, %s94
      %p108 = scmp.eq.s32.totalorder %s34, 1
      %p109 = por %p107, %p108
      %p111 = scmp.ne.s32.totalorder %s94, %s110
      %p112 = scmp.eq.s32.totalorder %s34, 0
      %p113 = por %p111, %p112
      %s114 = ssub.s32 %s28, %s35
      %p115 = scmp.eq.s32.totalorder %s114, 0
      %s117 = sadd.s32 %s116, 1
      %s118 = scalar_select %p115, %s116, %s117
      %p121 = pneg %p115
      %p122 = scmp.eq.s32.totalorder %s28, 1
      %p123 = por %p121, %p122
      %p124 = scmp.ne.s32.totalorder %s116, %s119
      %p125 = scmp.eq.s32.totalorder %s28, 0
      %p126 = por %p124, %p125
      %p127 = scmp.ne.s32.totalorder %s116, %s119
      %p128 = scmp.eq.s32.totalorder %s33, 1
      %p129 = por %p127, %p128
      %p130 = scmp.ne.s32.totalorder %s119, %s120
      %p131 = scmp.eq.s32.totalorder %s33, 0
      %p132 = por %p130, %p131
      %p133 = scmp.ne.s32.totalorder %s119, %s120
      %p134 = scmp.eq.s32.totalorder %s34, 1
      %p135 = por %p133, %p134
      %p137 = scmp.ne.s32.totalorder %s120, %s136
      %p138 = scmp.eq.s32.totalorder %s34, 0
      %p139 = por %p137, %p138
      %s140 = ssub.s32 %s28, %s35
      %p141 = scmp.eq.s32.totalorder %s140, 0
      %s143 = sadd.s32 %s142, 1
      %s144 = scalar_select %p141, %s142, %s143
      %p147 = pneg %p141
      %p148 = scmp.eq.s32.totalorder %s28, 1
      %p149 = por %p147, %p148
      %p150 = scmp.ne.s32.totalorder %s142, %s145
      %p151 = scmp.eq.s32.totalorder %s28, 0
      %p152 = por %p150, %p151
      %p153 = scmp.ne.s32.totalorder %s142, %s145
      %p154 = scmp.eq.s32.totalorder %s33, 1
      %p155 = por %p153, %p154
      %p156 = scmp.ne.s32.totalorder %s145, %s146
      %p157 = scmp.eq.s32.totalorder %s33, 0
      %p158 = por %p156, %p157
      %p159 = scmp.ne.s32.totalorder %s145, %s146
      %p160 = scmp.eq.s32.totalorder %s34, 1
      %p161 = por %p159, %p160
      %p163 = scmp.ne.s32.totalorder %s146, %s162
      %p164 = scmp.eq.s32.totalorder %s34, 0
      %p165 = por %p163, %p164
      %s167 = sadd.s32 %s166, 1
      %p170 = scmp.eq.s32.totalorder %s28, 1
      %p171 = scmp.ne.s32.totalorder %s166, %s168
      %p172 = scmp.eq.s32.totalorder %s28, 0
      %p173 = por %p171, %p172
      %p174 = scmp.ne.s32.totalorder %s166, %s168
      %p175 = scmp.eq.s32.totalorder %s33, 1
      %p176 = por %p174, %p175
      %p177 = scmp.ne.s32.totalorder %s168, %s169
      %p178 = scmp.eq.s32.totalorder %s33, 0
      %p179 = por %p177, %p178
      %p180 = scmp.ne.s32.totalorder %s168, %s169
      %p181 = scmp.eq.s32.totalorder %s34, 1
      %p182 = por %p180, %p181
      %p184 = scmp.ne.s32.totalorder %s169, %s183
      %p185 = scmp.eq.s32.totalorder %s34, 0
      %p186 = por %p184, %p185
      %s188 = sadd.s32 %s187, 1
      %p191 = scmp.eq.s32.totalorder %s28, 1
      %p192 = scmp.ne.s32.totalorder %s187, %s189
      %p193 = scmp.eq.s32.totalorder %s28, 0
      %p194 = por %p192, %p193
      %p195 = scmp.ne.s32.totalorder %s187, %s189
      %p196 = scmp.eq.s32.totalorder %s33, 1
      %p197 = por %p195, %p196
      %p198 = scmp.ne.s32.totalorder %s189, %s190
      %p199 = scmp.eq.s32.totalorder %s33, 0
      %p200 = por %p198, %p199
      %p201 = scmp.ne.s32.totalorder %s189, %s190
      %p202 = scmp.eq.s32.totalorder %s34, 1
      %p203 = por %p201, %p202
      %p205 = scmp.ne.s32.totalorder %s190, %s204
      %p206 = scmp.eq.s32.totalorder %s34, 0
      %p207 = por %p205, %p206
      %s209 = sadd.s32 %s208, 1
      %p212 = scmp.eq.s32.totalorder %s28, 1
      %p213 = scmp.ne.s32.totalorder %s208, %s210
      %p214 = scmp.eq.s32.totalorder %s28, 0
      %p215 = por %p213, %p214
      %p216 = scmp.ne.s32.totalorder %s208, %s210
      %p217 = scmp.eq.s32.totalorder %s33, 1
      %p218 = por %p216, %p217
      %p219 = scmp.ne.s32.totalorder %s210, %s211
      %p220 = scmp.eq.s32.totalorder %s33, 0
      %p221 = por %p219, %p220
      %p222 = scmp.ne.s32.totalorder %s210, %s211
      %p223 = scmp.eq.s32.totalorder %s34, 1
      %p224 = por %p222, %p223
      %p226 = scmp.ne.s32.totalorder %s211, %s225
      %p227 = scmp.eq.s32.totalorder %s34, 0
      %p228 = por %p226, %p227
      %s230 = sadd.s32 %s229, 1
      %p233 = scmp.eq.s32.totalorder %s28, 1
      %p234 = scmp.ne.s32.totalorder %s229, %s231
      %p235 = scmp.eq.s32.totalorder %s28, 0
      %p236 = por %p234, %p235
      %p237 = scmp.ne.s32.totalorder %s229, %s231
      %p238 = scmp.eq.s32.totalorder %s33, 1
      %p239 = por %p237, %p238
      %p240 = scmp.ne.s32.totalorder %s231, %s232
      %p241 = scmp.eq.s32.totalorder %s33, 0
      %p242 = por %p240, %p241
      %p243 = scmp.ne.s32.totalorder %s231, %s232
      %p244 = scmp.eq.s32.totalorder %s34, 1
      %p245 = por %p243, %p244
      %p247 = scmp.ne.s32.totalorder %s232, %s246
      %p248 = scmp.eq.s32.totalorder %s34, 0
      %p249 = por %p247, %p248
      %s251 = sadd.s32 %s250, 1
      %p254 = scmp.eq.s32.totalorder %s28, 1
      %p255 = scmp.ne.s32.totalorder %s250, %s252
      %p256 = scmp.eq.s32.totalorder %s28, 0
      %p257 = por %p255, %p256
      %p258 = scmp.ne.s32.totalorder %s250, %s252
      %p259 = scmp.eq.s32.totalorder %s33, 1
      %p260 = por %p258, %p259
      %p261 = scmp.ne.s32.totalorder %s252, %s253
      %p262 = scmp.eq.s32.totalorder %s33, 0
      %p263 = por %p261, %p262
      %p264 = scmp.ne.s32.totalorder %s252, %s253
      %p265 = scmp.eq.s32.totalorder %s34, 1
      %p266 = por %p264, %p265
      %p268 = scmp.ne.s32.totalorder %s253, %s267
      %p269 = scmp.eq.s32.totalorder %s34, 0
      %p270 = por %p268, %p269
      %s272 = sadd.s32 %s271, 1
      %p275 = scmp.eq.s32.totalorder %s28, 1
      %p276 = scmp.ne.s32.totalorder %s271, %s273
      %p277 = scmp.eq.s32.totalorder %s28, 0
      %p278 = por %p276, %p277
      %p279 = scmp.ne.s32.totalorder %s271, %s273
      %p280 = scmp.eq.s32.totalorder %s33, 1
      %p281 = por %p279, %p280
      %p282 = scmp.ne.s32.totalorder %s273, %s274
      %p283 = scmp.eq.s32.totalorder %s33, 0
      %p284 = por %p282, %p283
      %p285 = scmp.ne.s32.totalorder %s273, %s274
      %p286 = scmp.eq.s32.totalorder %s34, 1
      %p287 = por %p285, %p286
      %p289 = scmp.ne.s32.totalorder %s274, %s288
      %p290 = scmp.eq.s32.totalorder %s34, 0
      %p291 = por %p289, %p290
      %s293 = sadd.s32 %s292, 1
      %p296 = scmp.eq.s32.totalorder %s28, 1
      %p297 = scmp.ne.s32.totalorder %s292, %s294
      %p298 = scmp.eq.s32.totalorder %s28, 0
      %p299 = por %p297, %p298
      %p300 = scmp.ne.s32.totalorder %s292, %s294
      %p301 = scmp.eq.s32.totalorder %s33, 1
      %p302 = por %p300, %p301
      %p303 = scmp.ne.s32.totalorder %s294, %s295
      %p304 = scmp.eq.s32.totalorder %s33, 0
      %p305 = por %p303, %p304
      %p306 = scmp.ne.s32.totalorder %s294, %s295
      %p307 = scmp.eq.s32.totalorder %s34, 1
      %p308 = por %p306, %p307
      %p310 = scmp.ne.s32.totalorder %s295, %s309
      %p311 = scmp.eq.s32.totalorder %s34, 0
      %p312 = por %p310, %p311
      %s314 = sadd.s32 %s313, 1
      %p317 = scmp.eq.s32.totalorder %s28, 1
      %p318 = scmp.ne.s32.totalorder %s313, %s315
      %p319 = scmp.eq.s32.totalorder %s28, 0
      %p320 = por %p318, %p319
      %p321 = scmp.ne.s32.totalorder %s313, %s315
      %p322 = scmp.eq.s32.totalorder %s33, 1
      %p323 = por %p321, %p322
      %p324 = scmp.ne.s32.totalorder %s315, %s316
      %p325 = scmp.eq.s32.totalorder %s33, 0
      %p326 = por %p324, %p325
      %p327 = scmp.ne.s32.totalorder %s315, %s316
      %p328 = scmp.eq.s32.totalorder %s34, 1
      %p329 = por %p327, %p328
      %p331 = scmp.ne.s32.totalorder %s316, %s330
      %p332 = scmp.eq.s32.totalorder %s34, 0
      %p333 = por %p331, %p332
      %s334 = ssub.s32 %s28, %s35
      %p335 = scmp.eq.s32.totalorder %s334, 0
      %s337 = sadd.s32 %s336, 1
      %s338 = scalar_select %p335, %s336, %s337
      %p341 = pneg %p335
      %p342 = scmp.eq.s32.totalorder %s28, 1
      %p343 = por %p341, %p342
      %p344 = scmp.ne.s32.totalorder %s336, %s339
      %p345 = scmp.eq.s32.totalorder %s28, 0
      %p346 = por %p344, %p345
      %p347 = scmp.ne.s32.totalorder %s336, %s339
      %p348 = scmp.eq.s32.totalorder %s33, 1
      %p349 = por %p347, %p348
      %p350 = scmp.ne.s32.totalorder %s339, %s340
      %p351 = scmp.eq.s32.totalorder %s33, 0
      %p352 = por %p350, %p351
      %p353 = scmp.ne.s32.totalorder %s339, %s340
      %p354 = scmp.eq.s32.totalorder %s34, 1
      %p355 = por %p353, %p354
      %p357 = scmp.ne.s32.totalorder %s340, %s356
      %p358 = scmp.eq.s32.totalorder %s34, 0
      %p359 = por %p357, %p358
      %s360 = ssub.s32 %s28, %s35
      %p361 = scmp.eq.s32.totalorder %s360, 0
      %s363 = sadd.s32 %s362, 1
      %s364 = scalar_select %p361, %s362, %s363
      %p367 = pneg %p361
      %p368 = scmp.eq.s32.totalorder %s28, 1
      %p369 = por %p367, %p368
      %p370 = scmp.ne.s32.totalorder %s362, %s365
      %p371 = scmp.eq.s32.totalorder %s28, 0
      %p372 = por %p370, %p371
      %p373 = scmp.ne.s32.totalorder %s362, %s365
      %p374 = scmp.eq.s32.totalorder %s33, 1
      %p375 = por %p373, %p374
      %p376 = scmp.ne.s32.totalorder %s365, %s366
      %p377 = scmp.eq.s32.totalorder %s33, 0
      %p378 = por %p376, %p377
      %p379 = scmp.ne.s32.totalorder %s365, %s366
      %p380 = scmp.eq.s32.totalorder %s34, 1
      %p381 = por %p379, %p380
      %p383 = scmp.ne.s32.totalorder %s366, %s382
      %p384 = scmp.eq.s32.totalorder %s34, 0
      %p385 = por %p383, %p384
      %p386 = scmp.le.s32.totalorder 1, %s28
      %p387 = scmp.lt.s32.totalorder %s28, 3
      %p388 = pnand %p386, %p387
      %p389 = pneg %p388
      // Predicated region
      $region9: #{tpu_custom_call.1} parent=5 // pred_check
        _
      $region10: #{tpu_custom_call.1} parent=5 // pred_check_branch
        %391 = sbr.rel (%p388) target = $region12
      $region11: #{tpu_custom_call.1} parent=5 // pred_region
        %s392 = ssub.s32 %s28, 1
        // Predicated region
        $region13: #{tpu_custom_call.1} parent=11 // pred_check
          %p393 = pneg %p179
        $region14: #{tpu_custom_call.1} parent=11 // pred_check_branch
          %395 = sbr.rel (%p393) target = $region16
        $region15: #{tpu_custom_call.1} parent=11 // pred_region
          _
        $region16: #{tpu_custom_call.1} parent=11 // pred_fallthru
          _
        // Predicated region
        $region17: #{tpu_custom_call.1} parent=11 // pred_check
          %p396 = pneg %p200
        $region18: #{tpu_custom_call.1} parent=11 // pred_check_branch
          %398 = sbr.rel (%p396) target = $region20
        $region19: #{tpu_custom_call.1} parent=11 // pred_region
          _
        $region20: #{tpu_custom_call.1} parent=11 // pred_fallthru
          _
        // Predicated region
        $region21: #{tpu_custom_call.1} parent=11 // pred_check
          %p399 = pneg %p221
        $region22: #{tpu_custom_call.1} parent=11 // pred_check_branch
          %401 = sbr.rel (%p399) target = $region24
        $region23: #{tpu_custom_call.1} parent=11 // pred_region
          _
        $region24: #{tpu_custom_call.1} parent=11 // pred_fallthru
          _
        // Predicated region
        $region25: #{tpu_custom_call.1} parent=11 // pred_check
          %p402 = pneg %p242
        $region26: #{tpu_custom_call.1} parent=11 // pred_check_branch
          %404 = sbr.rel (%p402) target = $region28
        $region27: #{tpu_custom_call.1} parent=11 // pred_region
          _
        $region28: #{tpu_custom_call.1} parent=11 // pred_fallthru
          _
        // Predicated region
        $region29: #{tpu_custom_call.1} parent=11 // pred_check
          %p405 = pneg %p263
        $region30: #{tpu_custom_call.1} parent=11 // pred_check_branch
          %407 = sbr.rel (%p405) target = $region32
        $region31: #{tpu_custom_call.1} parent=11 // pred_region
          _
        $region32: #{tpu_custom_call.1} parent=11 // pred_fallthru
          _
        // Predicated region
        $region33: #{tpu_custom_call.1} parent=11 // pred_check
          %p408 = pneg %p284
        $region34: #{tpu_custom_call.1} parent=11 // pred_check_branch
          %410 = sbr.rel (%p408) target = $region36
        $region35: #{tpu_custom_call.1} parent=11 // pred_region
          _
        $region36: #{tpu_custom_call.1} parent=11 // pred_fallthru
          _
        // Predicated region
        $region37: #{tpu_custom_call.1} parent=11 // pred_check
          %p411 = pneg %p305
        $region38: #{tpu_custom_call.1} parent=11 // pred_check_branch
          %413 = sbr.rel (%p411) target = $region40
        $region39: #{tpu_custom_call.1} parent=11 // pred_region
          _
        $region40: #{tpu_custom_call.1} parent=11 // pred_fallthru
          _
        // Predicated region
        $region41: #{tpu_custom_call.1} parent=11 // pred_check
          %p414 = pneg %p326
        $region42: #{tpu_custom_call.1} parent=11 // pred_check_branch
          %416 = sbr.rel (%p414) target = $region44
        $region43: #{tpu_custom_call.1} parent=11 // pred_region
          %s418 = ssub.s32 16, 16
          %419 = vsyncadd [#allocation4], %s418
          %s421 = sshll.u32 %s12, 4
          %s422 = int_to_ptr.vmem [resolvable:$true] %s421
          %424 = dma.vmem_to_smem %s422, 16, [#allocation2], [#allocation4]
        $region44: #{tpu_custom_call.1} parent=11 // pred_fallthru
          _
      $region12: #{tpu_custom_call.1} parent=5 // pred_fallthru
        _
      %p425 = scmp.lt.s32.totalorder %s28, 2
      // Predicated region
      $region45: #{tpu_custom_call.1} parent=5 // pred_check
        %p426 = pneg %p425
      $region46: #{tpu_custom_call.1} parent=5 // pred_check_branch
        %428 = sbr.rel (%p426) target = $region48
      $region47: #{tpu_custom_call.1} parent=5 // pred_region
        // Predicated region
        $region49: #{tpu_custom_call.1} parent=47 // pred_check
          %p429 = pneg %p48
        $region50: #{tpu_custom_call.1} parent=47 // pred_check_branch
          %431 = sbr.rel (%p429) target = $region52
        $region51: #{tpu_custom_call.1} parent=47 // pred_region
          %p432 = scmp.lt.s32.totalorder %s28, 1
          %s433 = scalar_select %p432, %s28, 1
          %s434 = smul.addr %s433, 8
          %s435 = scalar_lea.vmem %s0, %s434
        $region52: #{tpu_custom_call.1} parent=47 // pred_fallthru
          _
        // Predicated region
        $region53: #{tpu_custom_call.1} parent=47 // pred_check
          %p436 = pneg %p74
        $region54: #{tpu_custom_call.1} parent=47 // pred_check_branch
          %438 = sbr.rel (%p436) target = $region56
        $region55: #{tpu_custom_call.1} parent=47 // pred_region
          %p439 = scmp.lt.s32.totalorder %s28, 1
          %s440 = scalar_select %p439, %s28, 1
          %s441 = smul.addr %s440, 8
          %s442 = scalar_lea.vmem %s1, %s441
        $region56: #{tpu_custom_call.1} parent=47 // pred_fallthru
          _
        // Predicated region
        $region57: #{tpu_custom_call.1} parent=47 // pred_check
          %p443 = pneg %p100
        $region58: #{tpu_custom_call.1} parent=47 // pred_check_branch
          %445 = sbr.rel (%p443) target = $region60
        $region59: #{tpu_custom_call.1} parent=47 // pred_region
          %p446 = scmp.lt.s32.totalorder %s28, 1
          %s447 = scalar_select %p446, %s28, 1
          %s448 = smul.addr %s447, 8
          %s449 = scalar_lea.vmem %s2, %s448
        $region60: #{tpu_custom_call.1} parent=47 // pred_fallthru
          _
        // Predicated region
        $region61: #{tpu_custom_call.1} parent=47 // pred_check
          %p450 = pneg %p126
        $region62: #{tpu_custom_call.1} parent=47 // pred_check_branch
          %452 = sbr.rel (%p450) target = $region64
        $region63: #{tpu_custom_call.1} parent=47 // pred_region
          %p453 = scmp.lt.s32.totalorder %s28, 1
          %s454 = scalar_select %p453, %s28, 1
          %s455 = smul.addr %s454, 8
          %s456 = scalar_lea.vmem %s3, %s455
        $region64: #{tpu_custom_call.1} parent=47 // pred_fallthru
          _
        // Predicated region
        $region65: #{tpu_custom_call.1} parent=47 // pred_check
          %p457 = pneg %p152
        $region66: #{tpu_custom_call.1} parent=47 // pred_check_branch
          %459 = sbr.rel (%p457) target = $region68
        $region67: #{tpu_custom_call.1} parent=47 // pred_region
          %p460 = scmp.lt.s32.totalorder %s28, 1
          %s461 = scalar_select %p460, %s28, 1
          %s462 = smul.addr %s461, 8
          %s463 = scalar_lea.vmem %s4, %s462
        $region68: #{tpu_custom_call.1} parent=47 // pred_fallthru
          _
      $region48: #{tpu_custom_call.1} parent=5 // pred_fallthru
        _
      %p464 = scmp.le.s32.totalorder 1, %s28
      %p465 = scmp.lt.s32.totalorder %s28, 3
      %p466 = pnand %p464, %p465
      %p467 = pneg %p466
      // Predicated region
      $region69: #{tpu_custom_call.1} parent=5 // pred_check
        _
      $region70: #{tpu_custom_call.1} parent=5 // pred_check_branch
        %469 = sbr.rel (%p466) target = $region72
      $region71: #{tpu_custom_call.1} parent=5 // pred_region
        %s470 = ssub.s32 %s28, 1
        // Predicated region
        $region73: #{tpu_custom_call.1} parent=71 // pred_check
          %p471 = pneg %p326
        $region74: #{tpu_custom_call.1} parent=71 // pred_check_branch
          %473 = sbr.rel (%p471) target = $region76
        $region75: #{tpu_custom_call.1} parent=71 // pred_region
          %474 = dma.done [#allocation4], 16
        $region76: #{tpu_custom_call.1} parent=71 // pred_fallthru
          _
        %475 = sfence
        %p476 = scmp.lt.s32.totalorder %s33, 1
        %s477 = scalar_select %p476, %s33, 1
        %s478 = smul.addr %s477, 8
        %s479 = scalar_lea.vmem %s0, %s478
        %p480 = pneg %p54
        %p481 = pneg %p51
        %p482 = scmp.lt.s32.totalorder %s33, 1
        %s483 = scalar_select %p482, %s33, 1
        %s484 = smul.addr %s483, 8
        %s485 = scalar_lea.vmem %s1, %s484
        %p486 = pneg %p80
        %p487 = pneg %p77
        %p488 = scmp.lt.s32.totalorder %s33, 1
        %s489 = scalar_select %p488, %s33, 1
        %s490 = smul.addr %s489, 8
        %s491 = scalar_lea.vmem %s2, %s490
        %p492 = pneg %p106
        %p493 = pneg %p103
        %p494 = scmp.lt.s32.totalorder %s33, 1
        %s495 = scalar_select %p494, %s33, 1
        %s496 = smul.addr %s495, 8
        %s497 = scalar_lea.vmem %s3, %s496
        %p498 = pneg %p132
        %p499 = pneg %p129
        %p500 = scmp.lt.s32.totalorder %s33, 1
        %s501 = scalar_select %p500, %s33, 1
        %s502 = smul.addr %s501, 8
        %s503 = scalar_lea.vmem %s4, %s502
        %p504 = pneg %p158
        %p505 = pneg %p155
        %p506 = pneg %p179
        %p507 = pneg %p176
        %p508 = pneg %p200
        %p509 = pneg %p197
        %p510 = pneg %p221
        %p511 = pneg %p218
        %p512 = pneg %p242
        %p513 = pneg %p239
        %p514 = pneg %p263
        %p515 = pneg %p260
        %p516 = pneg %p284
        %p517 = pneg %p281
        %p518 = pneg %p305
        %p519 = pneg %p302
        %p520 = pneg %p326
        %p521 = pneg %p323
        %p522 = pneg %p352
        %p523 = pneg %p349
        %s524 = sand.u32 %s339, 1
        %s525 = scalar_lea.sflag [#allocation3], %s524
        %s526 = sand.u32 %s339, 1
        %s527 = smul.addr %s526, 8
        %s528 = scalar_lea.vmem [#allocation5], %s527
        %p529 = pneg %p378
        %p530 = pneg %p375
        %s531 = sand.u32 %s365, 1
        %s532 = scalar_lea.sflag [#allocation7], %s531
        %s533 = sand.u32 %s365, 1
        %s534 = smul.addr %s533, 16
        %s535 = scalar_lea.vmem [#allocation6], %s534
        %p536 = scmp.lt.s32.totalorder %s33, 1
        %s537 = scalar_select %p536, %s33, 1
        %s538 = smul.addr %s537, 8
        %s539 = scalar_lea.vmem %s0, %s538
        %p540 = scmp.lt.s32.totalorder %s33, 1
        %s541 = scalar_select %p540, %s33, 1
        %s542 = smul.addr %s541, 8
        %s543 = scalar_lea.vmem %s1, %s542
        %p544 = scmp.lt.s32.totalorder %s33, 1
        %s545 = scalar_select %p544, %s33, 1
        %s546 = smul.addr %s545, 8
        %s547 = scalar_lea.vmem %s2, %s546
        %p548 = scmp.lt.s32.totalorder %s33, 1
        %s549 = scalar_select %p548, %s33, 1
        %s550 = smul.addr %s549, 8
        %s551 = scalar_lea.vmem %s3, %s550
        %p552 = scmp.lt.s32.totalorder %s33, 1
        %s553 = scalar_select %p552, %s33, 1
        %s554 = smul.addr %s553, 8
        %s555 = scalar_lea.vmem %s4, %s554
        %v556 = vld [vmem:[%s539] sm:$0xff]
        %v557 = vld [vmem:[%s543] sm:$0xff]
        %v558 = vld [vmem:[%s555] sm:$0xff]
        %v559 = vld [vmem:[%s5] sm:$0xff]
        %v560 = vld [vmem:[%s5 + $0x8] sm:$0xff]
        %v561 = vld [vmem:[%s5 + $0x10] sm:$0xff]
        %v562 = vld [vmem:[%s5 + $0x18] sm:$0xff]
        %vm563 = vcmask 261120
        %v565 = vsel %vm563, %v556, 0
        %567 = vmatprep.subr.mxu0 0.0
        %568 = vmatpush1.msra.mxu0 %v559
        %569 = vmatprep.subr.mxu0 0.0
        %570 = vmatpush1.msra.mxu0 %v560
        %571 = vmatprep.subr.mxu0 0.0
        %572 = vmatpush1.msra.mxu0 %v561
        %573 = vmatprep.subr.mxu0 0.0
        %574 = vmatpush1.msra.mxu0 %v562
        %575 = vmatprep.subr.mxu0 0.0
        %576 = vmatpush1.msra.mxu0 0.0
        %577 = vmatprep.subr.mxu0 0.0
        %578 = vmatpush1.msra.mxu0 0.0
        %579 = vmatprep.subr.mxu0 0.0
        %580 = vmatpush1.msra.mxu0 0.0
        %581 = vmatprep.subr.mxu0 0.0
        %582 = vmatpush1.msra.mxu0 0.0
        %583 = vmatprep.subr.mxu0 0.0
        %584 = vmatpush1.msra.mxu0 0.0
        %585 = vmatprep.subr.mxu0 0.0
        %586 = vmatpush1.msra.mxu0 0.0
        %587 = vmatprep.subr.mxu0 0.0
        %588 = vmatpush1.msra.mxu0 0.0
        %589 = vmatprep.subr.mxu0 0.0
        %590 = vmatpush1.msra.mxu0 0.0
        %591 = vmatprep.subr.mxu0 0.0
        %592 = vmatpush1.msra.mxu0 0.0
        %593 = vmatprep.subr.mxu0 0.0
        %594 = vmatpush1.msra.mxu0 0.0
        %595 = vmatprep.subr.mxu0 0.0
        %596 = vmatpush1.msra.mxu0 0.0
        %597 = vmatprep.subr.mxu0 0.0
        %598 = vmatpush1.msra.mxu0 0.0
        %599 = vmatprep.subr.mxu0 0.0
        %600 = vmatpush1.msra.mxu0 0.0
        %601 = vmatprep.subr.mxu0 0.0
        %602 = vmatpush1.msra.mxu0 0.0
        %603 = vmatprep.subr.mxu0 0.0
        %604 = vmatpush1.msra.mxu0 0.0
        %605 = vmatprep.subr.mxu0 0.0
        %606 = vmatpush1.msra.mxu0 0.0
        %607 = vmatprep.subr.mxu0 0.0
        %608 = vmatpush1.msra.mxu0 0.0
        %609 = vmatprep.subr.mxu0 0.0
        %610 = vmatpush1.msra.mxu0 0.0
        %611 = vmatprep.subr.mxu0 0.0
        %612 = vmatpush1.msra.mxu0 0.0
        %613 = vmatprep.subr.mxu0 0.0
        %614 = vmatpush1.msra.mxu0 0.0
        %615 = vmatprep.subr.mxu0 0.0
        %616 = vmatpush1.msra.mxu0 0.0
        %617 = vmatprep.subr.mxu0 0.0
        %618 = vmatpush1.msra.mxu0 0.0
        %619 = vmatprep.subr.mxu0 0.0
        %620 = vmatpush1.msra.mxu0 0.0
        %621 = vmatprep.subr.mxu0 0.0
        %622 = vmatpush1.msra.mxu0 0.0
        %623 = vmatprep.subr.mxu0 0.0
        %624 = vmatpush1.msra.mxu0 0.0
        %625 = vmatprep.subr.mxu0 0.0
        %626 = vmatpush1.msra.mxu0 0.0
        %627 = vmatprep.subr.mxu0 0.0
        %628 = vmatpush1.msra.mxu0 0.0
        %629 = vmatprep.subr.mxu0 0.0
        %630 = vmatpush1.msra.mxu0 0.0
        %631 = vmatprep.mubr.f32.mxu0 0.0
        %632 = vmatmul.mubr.f32.gmra.mrb[0].mxu0 %v565
        %v633 = vpop.f32.mrb[0].mxu0
        %v634 = vadd.f32 0.0, %v633
        %v635 = vpop.f32.mrb[0].mxu0
        %636 = vdwg.mxu0
        %v637 = vld [vmem:[%s547] sm:$0xff]
        %s638 = sld [smem:[#allocation2]]
        %s639 = sld [smem:[#allocation2 + $0x1]]
        %641 = vrot.lane.b32.xlu0 %v634, 112
        %v642 = vpop.permute.xlu0 %641
        %vm643 = vcmask 130048
        %v644 = vsel %vm643, %v634, 0
        %v646 = vsel %vm643, %v642, 0
        %648 = vmatprep.subr.mxu0 0.0
        %649 = vmatpush1.xpose.msra.mxu0 %v646
        %650 = vmatprep.subr.mxu0 0.0
        %651 = vmatpush1.xpose.msra.mxu0 0.0
        %652 = vmatprep.subr.mxu0 0.0
        %653 = vmatpush1.xpose.msra.mxu0 0.0
        %654 = vmatprep.subr.mxu0 0.0
        %655 = vmatpush1.xpose.msra.mxu0 0.0
        %656 = vmatprep.subr.mxu0 0.0
        %657 = vmatpush1.xpose.msra.mxu0 0.0
        %658 = vmatprep.subr.mxu0 0.0
        %659 = vmatpush1.xpose.msra.mxu0 0.0
        %660 = vmatprep.subr.mxu0 0.0
        %661 = vmatpush1.xpose.msra.mxu0 0.0
        %662 = vmatprep.subr.mxu0 0.0
        %663 = vmatpush1.xpose.msra.mxu0 0.0
        %664 = vmatprep.subr.mxu0 0.0
        %665 = vmatpush1.xpose.msra.mxu0 0.0
        %666 = vmatprep.subr.mxu0 0.0
        %667 = vmatpush1.xpose.msra.mxu0 0.0
        %668 = vmatprep.subr.mxu0 0.0
        %669 = vmatpush1.xpose.msra.mxu0 0.0
        %670 = vmatprep.subr.mxu0 0.0
        %671 = vmatpush1.xpose.msra.mxu0 0.0
        %672 = vmatprep.subr.mxu0 0.0
        %673 = vmatpush1.xpose.msra.mxu0 0.0
        %674 = vmatprep.subr.mxu0 0.0
        %675 = vmatpush1.xpose.msra.mxu0 0.0
        %676 = vmatprep.subr.mxu0 0.0
        %677 = vmatpush1.xpose.msra.mxu0 0.0
        %678 = vmatprep.subr.mxu0 0.0
        %679 = vmatpush1.xpose.msra.mxu0 0.0
        %680 = vmatprep.subr.mxu0 0.0
        %681 = vmatpush1.xpose.msra.mxu0 0.0
        %682 = vmatprep.subr.mxu0 0.0
        %683 = vmatpush1.xpose.msra.mxu0 0.0
        %684 = vmatprep.subr.mxu0 0.0
        %685 = vmatpush1.xpose.msra.mxu0 0.0
        %686 = vmatprep.subr.mxu0 0.0
        %687 = vmatpush1.xpose.msra.mxu0 0.0
        %688 = vmatprep.subr.mxu0 0.0
        %689 = vmatpush1.xpose.msra.mxu0 0.0
        %690 = vmatprep.subr.mxu0 0.0
        %691 = vmatpush1.xpose.msra.mxu0 0.0
        %692 = vmatprep.subr.mxu0 0.0
        %693 = vmatpush1.xpose.msra.mxu0 0.0
        %694 = vmatprep.subr.mxu0 0.0
        %695 = vmatpush1.xpose.msra.mxu0 0.0
        %696 = vmatprep.subr.mxu0 0.0
        %697 = vmatpush1.xpose.msra.mxu0 0.0
        %698 = vmatprep.subr.mxu0 0.0
        %699 = vmatpush1.xpose.msra.mxu0 0.0
        %700 = vmatprep.subr.mxu0 0.0
        %701 = vmatpush1.xpose.msra.mxu0 0.0
        %702 = vmatprep.subr.mxu0 0.0
        %703 = vmatpush1.xpose.msra.mxu0 0.0
        %704 = vmatprep.subr.mxu0 0.0
        %705 = vmatpush1.xpose.msra.mxu0 0.0
        %706 = vmatprep.subr.mxu0 0.0
        %707 = vmatpush1.xpose.msra.mxu0 0.0
        %708 = vmatprep.subr.mxu0 0.0
        %709 = vmatpush1.xpose.msra.mxu0 0.0
        %710 = vmatprep.subr.mxu0 0.0
        %711 = vmatpush1.xpose.msra.mxu0 0.0
        %712 = vmatprep.mubr.f32.mxu0 0.0
        %713 = vmatmul.mubr.f32.gmra.mrb[0].mxu0 %v644
        %v714 = vpop.f32.mrb[0].mxu0
        %v715 = vadd.f32 0.0, %v714
        %v716 = vpop.f32.mrb[0].mxu0
        %717 = vdwg.mxu0
        %v718 = vmul.f32 %v715, 0.25
        %v719 = vstv %s638
        %v720 = vmul.f32 %v719, %v558
        %v721 = vstv %s639
        %v722 = vadd.f32 %v720, %v721
        %v723 = vadd.f32 %v718, %v722
        %vm724 = vcmp.gt.f32.partialorder %v637, 0.5
        %v725 = vsel %vm724, -1e+09, %v723
        %vm726 = vcmask 64512
        %v727 = vsel %vm726, %v725, -inf
        %728 = vmax.xlane.f32.xlu0 %v727
        %v729 = vpop.xlane.xlu0 %728
        %v730 = vsub.f32 %v725, %v729
        %v731 = vmul.f32 %v730, 1.442695
        %v732 = vpow.pop %v731
        %v733 = vsel %vm726, %v732, 0.0
        %734 = vadd.xlane.f32.xlu0 %v733
        %v735 = vpop.xlane.xlu0 %734
        %v736 = vrcp.pop %v735
        %v737 = vmul.f32 %v732, %v736
        %738 = vrot.lane.b32.xlu0 %v634, 96
        %v739 = vpop.permute.xlu0 %738
        %v742 = vsel %vm726, %v737, 0
        %744 = vmatprep.subr.mxu0 0.0
        %745 = vmatpush1.msra.mxu0 %v739
        %746 = vmatprep.subr.mxu0 0.0
        %747 = vmatpush1.msra.mxu0 0.0
        %748 = vmatprep.subr.mxu0 0.0
        %749 = vmatpush1.msra.mxu0 0.0
        %750 = vmatprep.subr.mxu0 0.0
        %751 = vmatpush1.msra.mxu0 0.0
        %752 = vmatprep.subr.mxu0 0.0
        %753 = vmatpush1.msra.mxu0 0.0
        %754 = vmatprep.subr.mxu0 0.0
        %755 = vmatpush1.msra.mxu0 0.0
        %756 = vmatprep.subr.mxu0 0.0
        %757 = vmatpush1.msra.mxu0 0.0
        %758 = vmatprep.subr.mxu0 0.0
        %759 = vmatpush1.msra.mxu0 0.0
        %760 = vmatprep.subr.mxu0 0.0
        %761 = vmatpush1.msra.mxu0 0.0
        %762 = vmatprep.subr.mxu0 0.0
        %763 = vmatpush1.msra.mxu0 0.0
        %764 = vmatprep.subr.mxu0 0.0
        %765 = vmatpush1.msra.mxu0 0.0
        %766 = vmatprep.subr.mxu0 0.0
        %767 = vmatpush1.msra.mxu0 0.0
        %768 = vmatprep.subr.mxu0 0.0
        %769 = vmatpush1.msra.mxu0 0.0
        %770 = vmatprep.subr.mxu0 0.0
        %771 = vmatpush1.msra.mxu0 0.0
        %772 = vmatprep.subr.mxu0 0.0
        %773 = vmatpush1.msra.mxu0 0.0
        %774 = vmatprep.subr.mxu0 0.0
        %775 = vmatpush1.msra.mxu0 0.0
        %776 = vmatprep.subr.mxu0 0.0
        %777 = vmatpush1.msra.mxu0 0.0
        %778 = vmatprep.subr.mxu0 0.0
        %779 = vmatpush1.msra.mxu0 0.0
        %780 = vmatprep.subr.mxu0 0.0
        %781 = vmatpush1.msra.mxu0 0.0
        %782 = vmatprep.subr.mxu0 0.0
        %783 = vmatpush1.msra.mxu0 0.0
        %784 = vmatprep.subr.mxu0 0.0
        %785 = vmatpush1.msra.mxu0 0.0
        %786 = vmatprep.subr.mxu0 0.0
        %787 = vmatpush1.msra.mxu0 0.0
        %788 = vmatprep.subr.mxu0 0.0
        %789 = vmatpush1.msra.mxu0 0.0
        %790 = vmatprep.subr.mxu0 0.0
        %791 = vmatpush1.msra.mxu0 0.0
        %792 = vmatprep.subr.mxu0 0.0
        %793 = vmatpush1.msra.mxu0 0.0
        %794 = vmatprep.subr.mxu0 0.0
        %795 = vmatpush1.msra.mxu0 0.0
        %796 = vmatprep.subr.mxu0 0.0
        %797 = vmatpush1.msra.mxu0 0.0
        %798 = vmatprep.subr.mxu0 0.0
        %799 = vmatpush1.msra.mxu0 0.0
        %800 = vmatprep.subr.mxu0 0.0
        %801 = vmatpush1.msra.mxu0 0.0
        %802 = vmatprep.subr.mxu0 0.0
        %803 = vmatpush1.msra.mxu0 0.0
        %804 = vmatprep.subr.mxu0 0.0
        %805 = vmatpush1.msra.mxu0 0.0
        %806 = vmatprep.subr.mxu0 0.0
        %807 = vmatpush1.msra.mxu0 0.0
        %808 = vmatprep.mubr.f32.mxu0 0.0
        %809 = vmatmul.mubr.f32.gmra.mrb[0].mxu0 %v742
        %v810 = vpop.f32.mrb[0].mxu0
        %v811 = vadd.f32 0.0, %v810
        %v812 = vpop.f32.mrb[0].mxu0
        %813 = vdwg.mxu0
        %v814 = vld [vmem:[%s6] sm:$0xff]
        %v815 = vld [vmem:[%s6 + $0x8] sm:$0xff]
        %v817 = vsel %vm643, %v811, 0
        %819 = vmatprep.subr.mxu0 0.0
        %820 = vmatpush1.msra.mxu0 %v814
        %821 = vmatprep.subr.mxu0 0.0
        %822 = vmatpush1.msra.mxu0 %v815
        %823 = vmatprep.subr.mxu0 0.0
        %824 = vmatpush1.msra.mxu0 0.0
        %825 = vmatprep.subr.mxu0 0.0
        %826 = vmatpush1.msra.mxu0 0.0
        %827 = vmatprep.subr.mxu0 0.0
        %828 = vmatpush1.msra.mxu0 0.0
        %829 = vmatprep.subr.mxu0 0.0
        %830 = vmatpush1.msra.mxu0 0.0
        %831 = vmatprep.subr.mxu0 0.0
        %832 = vmatpush1.msra.mxu0 0.0
        %833 = vmatprep.subr.mxu0 0.0
        %834 = vmatpush1.msra.mxu0 0.0
        %835 = vmatprep.subr.mxu0 0.0
        %836 = vmatpush1.msra.mxu0 0.0
        %837 = vmatprep.subr.mxu0 0.0
        %838 = vmatpush1.msra.mxu0 0.0
        %839 = vmatprep.subr.mxu0 0.0
        %840 = vmatpush1.msra.mxu0 0.0
        %841 = vmatprep.subr.mxu0 0.0
        %842 = vmatpush1.msra.mxu0 0.0
        %843 = vmatprep.subr.mxu0 0.0
        %844 = vmatpush1.msra.mxu0 0.0
        %845 = vmatprep.subr.mxu0 0.0
        %846 = vmatpush1.msra.mxu0 0.0
        %847 = vmatprep.subr.mxu0 0.0
        %848 = vmatpush1.msra.mxu0 0.0
        %849 = vmatprep.subr.mxu0 0.0
        %850 = vmatpush1.msra.mxu0 0.0
        %851 = vmatprep.subr.mxu0 0.0
        %852 = vmatpush1.msra.mxu0 0.0
        %853 = vmatprep.subr.mxu0 0.0
        %854 = vmatpush1.msra.mxu0 0.0
        %855 = vmatprep.subr.mxu0 0.0
        %856 = vmatpush1.msra.mxu0 0.0
        %857 = vmatprep.subr.mxu0 0.0
        %858 = vmatpush1.msra.mxu0 0.0
        %859 = vmatprep.subr.mxu0 0.0
        %860 = vmatpush1.msra.mxu0 0.0
        %861 = vmatprep.subr.mxu0 0.0
        %862 = vmatpush1.msra.mxu0 0.0
        %863 = vmatprep.subr.mxu0 0.0
        %864 = vmatpush1.msra.mxu0 0.0
        %865 = vmatprep.subr.mxu0 0.0
        %866 = vmatpush1.msra.mxu0 0.0
        %867 = vmatprep.subr.mxu0 0.0
        %868 = vmatpush1.msra.mxu0 0.0
        %869 = vmatprep.subr.mxu0 0.0
        %870 = vmatpush1.msra.mxu0 0.0
        %871 = vmatprep.subr.mxu0 0.0
        %872 = vmatpush1.msra.mxu0 0.0
        %873 = vmatprep.subr.mxu0 0.0
        %874 = vmatpush1.msra.mxu0 0.0
        %875 = vmatprep.subr.mxu0 0.0
        %876 = vmatpush1.msra.mxu0 0.0
        %877 = vmatprep.subr.mxu0 0.0
        %878 = vmatpush1.msra.mxu0 0.0
        %879 = vmatprep.subr.mxu0 0.0
        %880 = vmatpush1.msra.mxu0 0.0
        %881 = vmatprep.subr.mxu0 0.0
        %882 = vmatpush1.msra.mxu0 0.0
        %883 = vmatprep.mubr.f32.mxu0 0.0
        %884 = vmatmul.mubr.f32.gmra.mrb[0].mxu0 %v817
        %v885 = vpop.f32.mrb[0].mxu0
        %v886 = vadd.f32 %v556, %v885
        %v887 = vpop.f32.mrb[0].mxu0
        %888 = vdwg.mxu0
        %v889 = vsel %vm563, %v886, 0.0
        %890 = vadd.xlane.f32.xlu0 %v889
        %v891 = vpop.xlane.xlu0 %890
        %v892 = vrcp.pop 32.0
        %v893 = vmul.f32 %v891, %v892
        %v894 = vsub.f32 %v886, %v893
        %v895 = vmul.f32 %v894, %v894
        %v896 = vsel %vm563, %v895, 0.0
        %897 = vadd.xlane.f32.xlu0 %v896
        %v898 = vpop.xlane.xlu0 %897
        %v899 = vmul.f32 %v898, %v892
        %v900 = vadd.f32 %v899, 1e-05
        %v901 = vrsqrt.pop %v900
        %v902 = vmul.f32 %v894, %v901
        %v903 = vld [vmem:[%s7] sm:$0xff]
        %v904 = vld [vmem:[%s7 + $0x8] sm:$0xff]
        %v905 = vld [vmem:[%s7 + $0x10] sm:$0xff]
        %v906 = vld [vmem:[%s7 + $0x18] sm:$0xff]
        %v908 = vsel %vm563, %v902, 0
        %910 = vmatprep.subr.mxu0 0.0
        %911 = vmatpush1.msra.mxu0 %v903
        %912 = vmatprep.subr.mxu0 0.0
        %913 = vmatpush1.msra.mxu0 %v904
        %914 = vmatprep.subr.mxu0 0.0
        %915 = vmatpush1.msra.mxu0 %v905
        %916 = vmatprep.subr.mxu0 0.0
        %917 = vmatpush1.msra.mxu0 %v906
        %918 = vmatprep.subr.mxu0 0.0
        %919 = vmatpush1.msra.mxu0 0.0
        %920 = vmatprep.subr.mxu0 0.0
        %921 = vmatpush1.msra.mxu0 0.0
        %922 = vmatprep.subr.mxu0 0.0
        %923 = vmatpush1.msra.mxu0 0.0
        %924 = vmatprep.subr.mxu0 0.0
        %925 = vmatpush1.msra.mxu0 0.0
        %926 = vmatprep.subr.mxu0 0.0
        %927 = vmatpush1.msra.mxu0 0.0
        %928 = vmatprep.subr.mxu0 0.0
        %929 = vmatpush1.msra.mxu0 0.0
        %930 = vmatprep.subr.mxu0 0.0
        %931 = vmatpush1.msra.mxu0 0.0
        %932 = vmatprep.subr.mxu0 0.0
        %933 = vmatpush1.msra.mxu0 0.0
        %934 = vmatprep.subr.mxu0 0.0
        %935 = vmatpush1.msra.mxu0 0.0
        %936 = vmatprep.subr.mxu0 0.0
        %937 = vmatpush1.msra.mxu0 0.0
        %938 = vmatprep.subr.mxu0 0.0
        %939 = vmatpush1.msra.mxu0 0.0
        %940 = vmatprep.subr.mxu0 0.0
        %941 = vmatpush1.msra.mxu0 0.0
        %942 = vmatprep.subr.mxu0 0.0
        %943 = vmatpush1.msra.mxu0 0.0
        %944 = vmatprep.subr.mxu0 0.0
        %945 = vmatpush1.msra.mxu0 0.0
        %946 = vmatprep.subr.mxu0 0.0
        %947 = vmatpush1.msra.mxu0 0.0
        %948 = vmatprep.subr.mxu0 0.0
        %949 = vmatpush1.msra.mxu0 0.0
        %950 = vmatprep.subr.mxu0 0.0
        %951 = vmatpush1.msra.mxu0 0.0
        %952 = vmatprep.subr.mxu0 0.0
        %953 = vmatpush1.msra.mxu0 0.0
        %954 = vmatprep.subr.mxu0 0.0
        %955 = vmatpush1.msra.mxu0 0.0
        %956 = vmatprep.subr.mxu0 0.0
        %957 = vmatpush1.msra.mxu0 0.0
        %958 = vmatprep.subr.mxu0 0.0
        %959 = vmatpush1.msra.mxu0 0.0
        %960 = vmatprep.subr.mxu0 0.0
        %961 = vmatpush1.msra.mxu0 0.0
        %962 = vmatprep.subr.mxu0 0.0
        %963 = vmatpush1.msra.mxu0 0.0
        %964 = vmatprep.subr.mxu0 0.0
        %965 = vmatpush1.msra.mxu0 0.0
        %966 = vmatprep.subr.mxu0 0.0
        %967 = vmatpush1.msra.mxu0 0.0
        %968 = vmatprep.subr.mxu0 0.0
        %969 = vmatpush1.msra.mxu0 0.0
        %970 = vmatprep.subr.mxu0 0.0
        %971 = vmatpush1.msra.mxu0 0.0
        %972 = vmatprep.subr.mxu0 0.0
        %973 = vmatpush1.msra.mxu0 0.0
        %974 = vmatprep.mubr.f32.mxu0 0.0
        %975 = vmatmul.mubr.f32.gmra.mrb[0].mxu0 %v908
        %v976 = vpop.f32.mrb[0].mxu0
        %v977 = vadd.f32 0.0, %v976
        %v978 = vpop.f32.mrb[0].mxu0
        %979 = vdwg.mxu0
        %v980 = vld [vmem:[%s8] sm:$0xff]
        %v981 = vld [vmem:[%s8 + $0x8] sm:$0xff]
        %v982 = vld [vmem:[%s8 + $0x10] sm:$0xff]
        %v983 = vld [vmem:[%s8 + $0x18] sm:$0xff]
        %v985 = vsel %vm563, %v557, 0
        %987 = vmatprep.subr.mxu0 0.0
        %988 = vmatpush1.msra.mxu0 %v980
        %989 = vmatprep.subr.mxu0 0.0
        %990 = vmatpush1.msra.mxu0 %v981
        %991 = vmatprep.subr.mxu0 0.0
        %992 = vmatpush1.msra.mxu0 %v982
        %993 = vmatprep.subr.mxu0 0.0
        %994 = vmatpush1.msra.mxu0 %v983
        %995 = vmatprep.subr.mxu0 0.0
        %996 = vmatpush1.msra.mxu0 0.0
        %997 = vmatprep.subr.mxu0 0.0
        %998 = vmatpush1.msra.mxu0 0.0
        %999 = vmatprep.subr.mxu0 0.0
        %1000 = vmatpush1.msra.mxu0 0.0
        %1001 = vmatprep.subr.mxu0 0.0
        %1002 = vmatpush1.msra.mxu0 0.0
        %1003 = vmatprep.subr.mxu0 0.0
        %1004 = vmatpush1.msra.mxu0 0.0
        %1005 = vmatprep.subr.mxu0 0.0
        %1006 = vmatpush1.msra.mxu0 0.0
        %1007 = vmatprep.subr.mxu0 0.0
        %1008 = vmatpush1.msra.mxu0 0.0
        %1009 = vmatprep.subr.mxu0 0.0
        %1010 = vmatpush1.msra.mxu0 0.0
        %1011 = vmatprep.subr.mxu0 0.0
        %1012 = vmatpush1.msra.mxu0 0.0
        %1013 = vmatprep.subr.mxu0 0.0
        %1014 = vmatpush1.msra.mxu0 0.0
        %1015 = vmatprep.subr.mxu0 0.0
        %1016 = vmatpush1.msra.mxu0 0.0
        %1017 = vmatprep.subr.mxu0 0.0
        %1018 = vmatpush1.msra.mxu0 0.0
        %1019 = vmatprep.subr.mxu0 0.0
        %1020 = vmatpush1.msra.mxu0 0.0
        %1021 = vmatprep.subr.mxu0 0.0
        %1022 = vmatpush1.msra.mxu0 0.0
        %1023 = vmatprep.subr.mxu0 0.0
        %1024 = vmatpush1.msra.mxu0 0.0
        %1025 = vmatprep.subr.mxu0 0.0
        %1026 = vmatpush1.msra.mxu0 0.0
        %1027 = vmatprep.subr.mxu0 0.0
        %1028 = vmatpush1.msra.mxu0 0.0
        %1029 = vmatprep.subr.mxu0 0.0
        %1030 = vmatpush1.msra.mxu0 0.0
        %1031 = vmatprep.subr.mxu0 0.0
        %1032 = vmatpush1.msra.mxu0 0.0
        %1033 = vmatprep.subr.mxu0 0.0
        %1034 = vmatpush1.msra.mxu0 0.0
        %1035 = vmatprep.subr.mxu0 0.0
        %1036 = vmatpush1.msra.mxu0 0.0
        %1037 = vmatprep.subr.mxu0 0.0
        %1038 = vmatpush1.msra.mxu0 0.0
        %1039 = vmatprep.subr.mxu0 0.0
        %1040 = vmatpush1.msra.mxu0 0.0
        %1041 = vmatprep.subr.mxu0 0.0
        %1042 = vmatpush1.msra.mxu0 0.0
        %1043 = vmatprep.subr.mxu0 0.0
        %1044 = vmatpush1.msra.mxu0 0.0
        %1045 = vmatprep.subr.mxu0 0.0
        %1046 = vmatpush1.msra.mxu0 0.0
        %1047 = vmatprep.subr.mxu0 0.0
        %1048 = vmatpush1.msra.mxu0 0.0
        %1049 = vmatprep.subr.mxu0 0.0
        %1050 = vmatpush1.msra.mxu0 0.0
        %1051 = vmatprep.mubr.f32.mxu0 0.0
        %1052 = vmatmul.mubr.f32.gmra.mrb[0].mxu0 %v985
        %v1053 = vpop.f32.mrb[0].mxu0
        %v1054 = vadd.f32 0.0, %v1053
        %v1055 = vpop.f32.mrb[0].mxu0
        %1056 = vdwg.mxu0
        %v1057 = vld [vmem:[%s551] sm:$0xff]
        %s1058 = sld [smem:[#allocation2 + $0x2]]
        %s1059 = sld [smem:[#allocation2 + $0x3]]
        %v1061 = vsel %vm643, %v977, 0
        %v1064 = vsel %vm643, %v1054, 0
        %1066 = vmatprep.subr.mxu0 0.0
        %1067 = vmatpush1.xpose.msra.mxu0 %v1064
        %1068 = vmatprep.subr.mxu0 0.0
        %1069 = vmatpush1.xpose.msra.mxu0 0.0
        %1070 = vmatprep.subr.mxu0 0.0
        %1071 = vmatpush1.xpose.msra.mxu0 0.0
        %1072 = vmatprep.subr.mxu0 0.0
        %1073 = vmatpush1.xpose.msra.mxu0 0.0
        %1074 = vmatprep.subr.mxu0 0.0
        %1075 = vmatpush1.xpose.msra.mxu0 0.0
        %1076 = vmatprep.subr.mxu0 0.0
        %1077 = vmatpush1.xpose.msra.mxu0 0.0
        %1078 = vmatprep.subr.mxu0 0.0
        %1079 = vmatpush1.xpose.msra.mxu0 0.0
        %1080 = vmatprep.subr.mxu0 0.0
        %1081 = vmatpush1.xpose.msra.mxu0 0.0
        %1082 = vmatprep.subr.mxu0 0.0
        %1083 = vmatpush1.xpose.msra.mxu0 0.0
        %1084 = vmatprep.subr.mxu0 0.0
        %1085 = vmatpush1.xpose.msra.mxu0 0.0
        %1086 = vmatprep.subr.mxu0 0.0
        %1087 = vmatpush1.xpose.msra.mxu0 0.0
        %1088 = vmatprep.subr.mxu0 0.0
        %1089 = vmatpush1.xpose.msra.mxu0 0.0
        %1090 = vmatprep.subr.mxu0 0.0
        %1091 = vmatpush1.xpose.msra.mxu0 0.0
        %1092 = vmatprep.subr.mxu0 0.0
        %1093 = vmatpush1.xpose.msra.mxu0 0.0
        %1094 = vmatprep.subr.mxu0 0.0
        %1095 = vmatpush1.xpose.msra.mxu0 0.0
        %1096 = vmatprep.subr.mxu0 0.0
        %1097 = vmatpush1.xpose.msra.mxu0 0.0
        %1098 = vmatprep.subr.mxu0 0.0
        %1099 = vmatpush1.xpose.msra.mxu0 0.0
        %1100 = vmatprep.subr.mxu0 0.0
        %1101 = vmatpush1.xpose.msra.mxu0 0.0
        %1102 = vmatprep.subr.mxu0 0.0
        %1103 = vmatpush1.xpose.msra.mxu0 0.0
        %1104 = vmatprep.subr.mxu0 0.0
        %1105 = vmatpush1.xpose.msra.mxu0 0.0
        %1106 = vmatprep.subr.mxu0 0.0
        %1107 = vmatpush1.xpose.msra.mxu0 0.0
        %1108 = vmatprep.subr.mxu0 0.0
        %1109 = vmatpush1.xpose.msra.mxu0 0.0
        %1110 = vmatprep.subr.mxu0 0.0
        %1111 = vmatpush1.xpose.msra.mxu0 0.0
        %1112 = vmatprep.subr.mxu0 0.0
        %1113 = vmatpush1.xpose.msra.mxu0 0.0
        %1114 = vmatprep.subr.mxu0 0.0
        %1115 = vmatpush1.xpose.msra.mxu0 0.0
        %1116 = vmatprep.subr.mxu0 0.0
        %1117 = vmatpush1.xpose.msra.mxu0 0.0
        %1118 = vmatprep.subr.mxu0 0.0
        %1119 = vmatpush1.xpose.msra.mxu0 0.0
        %1120 = vmatprep.subr.mxu0 0.0
        %1121 = vmatpush1.xpose.msra.mxu0 0.0
        %1122 = vmatprep.subr.mxu0 0.0
        %1123 = vmatpush1.xpose.msra.mxu0 0.0
        %1124 = vmatprep.subr.mxu0 0.0
        %1125 = vmatpush1.xpose.msra.mxu0 0.0
        %1126 = vmatprep.subr.mxu0 0.0
        %1127 = vmatpush1.xpose.msra.mxu0 0.0
        %1128 = vmatprep.subr.mxu0 0.0
        %1129 = vmatpush1.xpose.msra.mxu0 0.0
        %1130 = vmatprep.mubr.f32.mxu0 0.0
        %1131 = vmatmul.mubr.f32.gmra.mrb[0].mxu0 %v1061
        %v1132 = vpop.f32.mrb[0].mxu0
        %v1133 = vadd.f32 0.0, %v1132
        %v1134 = vpop.f32.mrb[0].mxu0
        %1135 = vdwg.mxu0
        %v1136 = vmul.f32 %v1133, 0.25
        %v1137 = vstv %s1058
        %v1138 = vmul.f32 %v1137, %v558
        %v1139 = vstv %s1059
        %v1140 = vadd.f32 %v1138, %v1139
        %v1141 = vadd.f32 %v1136, %v1140
        %vm1142 = vcmp.gt.f32.partialorder %v1057, 0.5
        %v1143 = vsel %vm1142, -1e+09, %v1141
        %v1144 = vsel %vm726, %v1143, -inf
        %1145 = vmax.xlane.f32.xlu0 %v1144
        %v1146 = vpop.xlane.xlu0 %1145
        %v1147 = vsub.f32 %v1143, %v1146
        %v1148 = vmul.f32 %v1147, 1.442695
        %v1149 = vpow.pop %v1148
        %v1150 = vsel %vm726, %v1149, 0.0
        %1151 = vadd.xlane.f32.xlu0 %v1150
        %v1152 = vpop.xlane.xlu0 %1151
        %v1153 = vrcp.pop %v1152
        %v1154 = vmul.f32 %v1149, %v1153
        %1155 = vrot.lane.b32.xlu0 %v1054, 112
        %v1156 = vpop.permute.xlu0 %1155
        %v1159 = vsel %vm726, %v1154, 0
        %1161 = vmatprep.subr.mxu0 0.0
        %1162 = vmatpush1.msra.mxu0 %v1156
        %1163 = vmatprep.subr.mxu0 0.0
        %1164 = vmatpush1.msra.mxu0 0.0
        %1165 = vmatprep.subr.mxu0 0.0
        %1166 = vmatpush1.msra.mxu0 0.0
        %1167 = vmatprep.subr.mxu0 0.0
        %1168 = vmatpush1.msra.mxu0 0.0
        %1169 = vmatprep.subr.mxu0 0.0
        %1170 = vmatpush1.msra.mxu0 0.0
        %1171 = vmatprep.subr.mxu0 0.0
        %1172 = vmatpush1.msra.mxu0 0.0
        %1173 = vmatprep.subr.mxu0 0.0
        %1174 = vmatpush1.msra.mxu0 0.0
        %1175 = vmatprep.subr.mxu0 0.0
        %1176 = vmatpush1.msra.mxu0 0.0
        %1177 = vmatprep.subr.mxu0 0.0
        %1178 = vmatpush1.msra.mxu0 0.0
        %1179 = vmatprep.subr.mxu0 0.0
        %1180 = vmatpush1.msra.mxu0 0.0
        %1181 = vmatprep.subr.mxu0 0.0
        %1182 = vmatpush1.msra.mxu0 0.0
        %1183 = vmatprep.subr.mxu0 0.0
        %1184 = vmatpush1.msra.mxu0 0.0
        %1185 = vmatprep.subr.mxu0 0.0
        %1186 = vmatpush1.msra.mxu0 0.0
        %1187 = vmatprep.subr.mxu0 0.0
        %1188 = vmatpush1.msra.mxu0 0.0
        %1189 = vmatprep.subr.mxu0 0.0
        %1190 = vmatpush1.msra.mxu0 0.0
        %1191 = vmatprep.subr.mxu0 0.0
        %1192 = vmatpush1.msra.mxu0 0.0
        %1193 = vmatprep.subr.mxu0 0.0
        %1194 = vmatpush1.msra.mxu0 0.0
        %1195 = vmatprep.subr.mxu0 0.0
        %1196 = vmatpush1.msra.mxu0 0.0
        %1197 = vmatprep.subr.mxu0 0.0
        %1198 = vmatpush1.msra.mxu0 0.0
        %1199 = vmatprep.subr.mxu0 0.0
        %1200 = vmatpush1.msra.mxu0 0.0
        %1201 = vmatprep.subr.mxu0 0.0
        %1202 = vmatpush1.msra.mxu0 0.0
        %1203 = vmatprep.subr.mxu0 0.0
        %1204 = vmatpush1.msra.mxu0 0.0
        %1205 = vmatprep.subr.mxu0 0.0
        %1206 = vmatpush1.msra.mxu0 0.0
        %1207 = vmatprep.subr.mxu0 0.0
        %1208 = vmatpush1.msra.mxu0 0.0
        %1209 = vmatprep.subr.mxu0 0.0
        %1210 = vmatpush1.msra.mxu0 0.0
        %1211 = vmatprep.subr.mxu0 0.0
        %1212 = vmatpush1.msra.mxu0 0.0
        %1213 = vmatprep.subr.mxu0 0.0
        %1214 = vmatpush1.msra.mxu0 0.0
        %1215 = vmatprep.subr.mxu0 0.0
        %1216 = vmatpush1.msra.mxu0 0.0
        %1217 = vmatprep.subr.mxu0 0.0
        %1218 = vmatpush1.msra.mxu0 0.0
        %1219 = vmatprep.subr.mxu0 0.0
        %1220 = vmatpush1.msra.mxu0 0.0
        %1221 = vmatprep.subr.mxu0 0.0
        %1222 = vmatpush1.msra.mxu0 0.0
        %1223 = vmatprep.subr.mxu0 0.0
        %1224 = vmatpush1.msra.mxu0 0.0
        %1225 = vmatprep.mubr.f32.mxu0 0.0
        %1226 = vmatmul.mubr.f32.gmra.mrb[0].mxu0 %v1159
        %v1227 = vpop.f32.mrb[0].mxu0
        %v1228 = vadd.f32 0.0, %v1227
        %v1229 = vpop.f32.mrb[0].mxu0
        %1230 = vdwg.mxu0
        %v1231 = vld [vmem:[%s9] sm:$0xff]
        %v1232 = vld [vmem:[%s9 + $0x8] sm:$0xff]
        %v1234 = vsel %vm643, %v1228, 0
        %1236 = vmatprep.subr.mxu0 0.0
        %1237 = vmatpush1.msra.mxu0 %v1231
        %1238 = vmatprep.subr.mxu0 0.0
        %1239 = vmatpush1.msra.mxu0 %v1232
        %1240 = vmatprep.subr.mxu0 0.0
        %1241 = vmatpush1.msra.mxu0 0.0
        %1242 = vmatprep.subr.mxu0 0.0
        %1243 = vmatpush1.msra.mxu0 0.0
        %1244 = vmatprep.subr.mxu0 0.0
        %1245 = vmatpush1.msra.mxu0 0.0
        %1246 = vmatprep.subr.mxu0 0.0
        %1247 = vmatpush1.msra.mxu0 0.0
        %1248 = vmatprep.subr.mxu0 0.0
        %1249 = vmatpush1.msra.mxu0 0.0
        %1250 = vmatprep.subr.mxu0 0.0
        %1251 = vmatpush1.msra.mxu0 0.0
        %1252 = vmatprep.subr.mxu0 0.0
        %1253 = vmatpush1.msra.mxu0 0.0
        %1254 = vmatprep.subr.mxu0 0.0
        %1255 = vmatpush1.msra.mxu0 0.0
        %1256 = vmatprep.subr.mxu0 0.0
        %1257 = vmatpush1.msra.mxu0 0.0
        %1258 = vmatprep.subr.mxu0 0.0
        %1259 = vmatpush1.msra.mxu0 0.0
        %1260 = vmatprep.subr.mxu0 0.0
        %1261 = vmatpush1.msra.mxu0 0.0
        %1262 = vmatprep.subr.mxu0 0.0
        %1263 = vmatpush1.msra.mxu0 0.0
        %1264 = vmatprep.subr.mxu0 0.0
        %1265 = vmatpush1.msra.mxu0 0.0
        %1266 = vmatprep.subr.mxu0 0.0
        %1267 = vmatpush1.msra.mxu0 0.0
        %1268 = vmatprep.subr.mxu0 0.0
        %1269 = vmatpush1.msra.mxu0 0.0
        %1270 = vmatprep.subr.mxu0 0.0
        %1271 = vmatpush1.msra.mxu0 0.0
        %1272 = vmatprep.subr.mxu0 0.0
        %1273 = vmatpush1.msra.mxu0 0.0
        %1274 = vmatprep.subr.mxu0 0.0
        %1275 = vmatpush1.msra.mxu0 0.0
        %1276 = vmatprep.subr.mxu0 0.0
        %1277 = vmatpush1.msra.mxu0 0.0
        %1278 = vmatprep.subr.mxu0 0.0
        %1279 = vmatpush1.msra.mxu0 0.0
        %1280 = vmatprep.subr.mxu0 0.0
        %1281 = vmatpush1.msra.mxu0 0.0
        %1282 = vmatprep.subr.mxu0 0.0
        %1283 = vmatpush1.msra.mxu0 0.0
        %1284 = vmatprep.subr.mxu0 0.0
        %1285 = vmatpush1.msra.mxu0 0.0
        %1286 = vmatprep.subr.mxu0 0.0
        %1287 = vmatpush1.msra.mxu0 0.0
        %1288 = vmatprep.subr.mxu0 0.0
        %1289 = vmatpush1.msra.mxu0 0.0
        %1290 = vmatprep.subr.mxu0 0.0
        %1291 = vmatpush1.msra.mxu0 0.0
        %1292 = vmatprep.subr.mxu0 0.0
        %1293 = vmatpush1.msra.mxu0 0.0
        %1294 = vmatprep.subr.mxu0 0.0
        %1295 = vmatpush1.msra.mxu0 0.0
        %1296 = vmatprep.subr.mxu0 0.0
        %1297 = vmatpush1.msra.mxu0 0.0
        %1298 = vmatprep.subr.mxu0 0.0
        %1299 = vmatpush1.msra.mxu0 0.0
        %1300 = vmatprep.mubr.f32.mxu0 0.0
        %1301 = vmatmul.mubr.f32.gmra.mrb[0].mxu0 %v1234
        %v1302 = vpop.f32.mrb[0].mxu0
        %v1303 = vadd.f32 %v902, %v1302
        %v1304 = vpop.f32.mrb[0].mxu0
        %1305 = vdwg.mxu0
        %v1306 = vsel %vm563, %v1303, 0.0
        %1307 = vadd.xlane.f32.xlu0 %v1306
        %v1308 = vpop.xlane.xlu0 %1307
        %v1309 = vmul.f32 %v1308, %v892
        %v1310 = vsub.f32 %v1303, %v1309
        %v1311 = vmul.f32 %v1310, %v1310
        %v1312 = vsel %vm563, %v1311, 0.0
        %1313 = vadd.xlane.f32.xlu0 %v1312
        %v1314 = vpop.xlane.xlu0 %1313
        %v1315 = vmul.f32 %v1314, %v892
        %v1316 = vadd.f32 %v1315, 1e-05
        %v1317 = vrsqrt.pop %v1316
        %v1318 = vmul.f32 %v1310, %v1317
        %v1319 = vld [vmem:[%s10] sm:$0xff]
        %v1320 = vld [vmem:[%s10 + $0x8] sm:$0xff]
        %v1321 = vld [vmem:[%s10 + $0x10] sm:$0xff]
        %v1322 = vld [vmem:[%s10 + $0x18] sm:$0xff]
        %v1323 = vld [vmem:[%s10 + $0x20] sm:$0xff]
        %v1324 = vld [vmem:[%s10 + $0x28] sm:$0xff]
        %v1325 = vld [vmem:[%s10 + $0x30] sm:$0xff]
        %v1326 = vld [vmem:[%s10 + $0x38] sm:$0xff]
        %v1328 = vsel %vm563, %v1318, 0
        %1330 = vmatprep.subr.mxu0 %v1320
        %1331 = vmatpush1.msra.mxu0 %v1319
        %1332 = vmatprep.subr.mxu0 %v1322
        %1333 = vmatpush1.msra.mxu0 %v1321
        %1334 = vmatprep.subr.mxu0 %v1324
        %1335 = vmatpush1.msra.mxu0 %v1323
        %1336 = vmatprep.subr.mxu0 %v1326
        %1337 = vmatpush1.msra.mxu0 %v1325
        %1338 = vmatprep.subr.mxu0 0.0
        %1339 = vmatpush1.msra.mxu0 0.0
        %1340 = vmatprep.subr.mxu0 0.0
        %1341 = vmatpush1.msra.mxu0 0.0
        %1342 = vmatprep.subr.mxu0 0.0
        %1343 = vmatpush1.msra.mxu0 0.0
        %1344 = vmatprep.subr.mxu0 0.0
        %1345 = vmatpush1.msra.mxu0 0.0
        %1346 = vmatprep.subr.mxu0 0.0
        %1347 = vmatpush1.msra.mxu0 0.0
        %1348 = vmatprep.subr.mxu0 0.0
        %1349 = vmatpush1.msra.mxu0 0.0
        %1350 = vmatprep.subr.mxu0 0.0
        %1351 = vmatpush1.msra.mxu0 0.0
        %1352 = vmatprep.subr.mxu0 0.0
        %1353 = vmatpush1.msra.mxu0 0.0
        %1354 = vmatprep.subr.mxu0 0.0
        %1355 = vmatpush1.msra.mxu0 0.0
        %1356 = vmatprep.subr.mxu0 0.0
        %1357 = vmatpush1.msra.mxu0 0.0
        %1358 = vmatprep.subr.mxu0 0.0
        %1359 = vmatpush1.msra.mxu0 0.0
        %1360 = vmatprep.subr.mxu0 0.0
        %1361 = vmatpush1.msra.mxu0 0.0
        %1362 = vmatprep.subr.mxu0 0.0
        %1363 = vmatpush1.msra.mxu0 0.0
        %1364 = vmatprep.subr.mxu0 0.0
        %1365 = vmatpush1.msra.mxu0 0.0
        %1366 = vmatprep.subr.mxu0 0.0
        %1367 = vmatpush1.msra.mxu0 0.0
        %1368 = vmatprep.subr.mxu0 0.0
        %1369 = vmatpush1.msra.mxu0 0.0
        %1370 = vmatprep.subr.mxu0 0.0
        %1371 = vmatpush1.msra.mxu0 0.0
        %1372 = vmatprep.subr.mxu0 0.0
        %1373 = vmatpush1.msra.mxu0 0.0
        %1374 = vmatprep.subr.mxu0 0.0
        %1375 = vmatpush1.msra.mxu0 0.0
        %1376 = vmatprep.subr.mxu0 0.0
        %1377 = vmatpush1.msra.mxu0 0.0
        %1378 = vmatprep.subr.mxu0 0.0
        %1379 = vmatpush1.msra.mxu0 0.0
        %1380 = vmatprep.subr.mxu0 0.0
        %1381 = vmatpush1.msra.mxu0 0.0
        %1382 = vmatprep.subr.mxu0 0.0
        %1383 = vmatpush1.msra.mxu0 0.0
        %1384 = vmatprep.subr.mxu0 0.0
        %1385 = vmatpush1.msra.mxu0 0.0
        %1386 = vmatprep.subr.mxu0 0.0
        %1387 = vmatpush1.msra.mxu0 0.0
        %1388 = vmatprep.subr.mxu0 0.0
        %1389 = vmatpush1.msra.mxu0 0.0
        %1390 = vmatprep.subr.mxu0 0.0
        %1391 = vmatpush1.msra.mxu0 0.0
        %1392 = vmatprep.subr.mxu0 0.0
        %1393 = vmatpush1.msra.mxu0 0.0
        %1394 = vmatprep.mubr.f32.mxu0 0.0
        %1395 = vmatmul.mubr.f32.gmra.mrb[0].mxu0 %v1328
        %v1396 = vpop.f32.mrb[0].mxu0
        %v1397 = vadd.f32 0.0, %v1396
        %v1398 = vpop.f32.mrb[0].mxu0
        %v1399 = vadd.f32 0.0, %v1398
        %1400 = vdwg.mxu0
        %v1401 = vmax.f32 %v1397, 0.0
        %v1402 = vmax.f32 %v1399, 0.0
        %v1403 = vld [vmem:[%s11] sm:$0xff]
        %v1404 = vld [vmem:[%s11 + $0x8] sm:$0xff]
        %v1405 = vld [vmem:[%s11 + $0x10] sm:$0xff]
        %v1406 = vld [vmem:[%s11 + $0x18] sm:$0xff]
        %v1407 = vld [vmem:[%s11 + $0x20] sm:$0xff]
        %v1408 = vld [vmem:[%s11 + $0x28] sm:$0xff]
        %v1409 = vld [vmem:[%s11 + $0x30] sm:$0xff]
        %v1410 = vld [vmem:[%s11 + $0x38] sm:$0xff]
        %v1411 = vld [vmem:[%s11 + $0x40] sm:$0xff]
        %v1412 = vld [vmem:[%s11 + $0x48] sm:$0xff]
        %v1413 = vld [vmem:[%s11 + $0x50] sm:$0xff]
        %v1414 = vld [vmem:[%s11 + $0x58] sm:$0xff]
        %v1415 = vld [vmem:[%s11 + $0x60] sm:$0xff]
        %v1416 = vld [vmem:[%s11 + $0x68] sm:$0xff]
        %v1417 = vld [vmem:[%s11 + $0x70] sm:$0xff]
        %v1418 = vld [vmem:[%s11 + $0x78] sm:$0xff]
        %v1419 = vld [vmem:[%s11 + $0x80] sm:$0xff]
        %v1420 = vld [vmem:[%s11 + $0x88] sm:$0xff]
        %v1421 = vld [vmem:[%s11 + $0x90] sm:$0xff]
        %v1422 = vld [vmem:[%s11 + $0x98] sm:$0xff]
        %v1423 = vld [vmem:[%s11 + $0xa0] sm:$0xff]
        %v1424 = vld [vmem:[%s11 + $0xa8] sm:$0xff]
        %v1425 = vld [vmem:[%s11 + $0xb0] sm:$0xff]
        %v1426 = vld [vmem:[%s11 + $0xb8] sm:$0xff]
        %v1427 = vld [vmem:[%s11 + $0xc0] sm:$0xff]
        %v1428 = vld [vmem:[%s11 + $0xc8] sm:$0xff]
        %v1429 = vld [vmem:[%s11 + $0xd0] sm:$0xff]
        %v1430 = vld [vmem:[%s11 + $0xd8] sm:$0xff]
        %v1431 = vld [vmem:[%s11 + $0xe0] sm:$0xff]
        %v1432 = vld [vmem:[%s11 + $0xe8] sm:$0xff]
        %v1433 = vld [vmem:[%s11 + $0xf0] sm:$0xff]
        %v1434 = vld [vmem:[%s11 + $0xf8] sm:$0xff]
        %1435 = vmatprep.subr.mxu0 0.0
        %1436 = vmatpush1.msra.mxu0 %v1403
        %1437 = vmatprep.subr.mxu0 0.0
        %1438 = vmatpush1.msra.mxu0 %v1404
        %1439 = vmatprep.subr.mxu0 0.0
        %1440 = vmatpush1.msra.mxu0 %v1405
        %1441 = vmatprep.subr.mxu0 0.0
        %1442 = vmatpush1.msra.mxu0 %v1406
        %1443 = vmatprep.subr.mxu0 0.0
        %1444 = vmatpush1.msra.mxu0 %v1407
        %1445 = vmatprep.subr.mxu0 0.0
        %1446 = vmatpush1.msra.mxu0 %v1408
        %1447 = vmatprep.subr.mxu0 0.0
        %1448 = vmatpush1.msra.mxu0 %v1409
        %1449 = vmatprep.subr.mxu0 0.0
        %1450 = vmatpush1.msra.mxu0 %v1410
        %1451 = vmatprep.subr.mxu0 0.0
        %1452 = vmatpush1.msra.mxu0 %v1411
        %1453 = vmatprep.subr.mxu0 0.0
        %1454 = vmatpush1.msra.mxu0 %v1412
        %1455 = vmatprep.subr.mxu0 0.0
        %1456 = vmatpush1.msra.mxu0 %v1413
        %1457 = vmatprep.subr.mxu0 0.0
        %1458 = vmatpush1.msra.mxu0 %v1414
        %1459 = vmatprep.subr.mxu0 0.0
        %1460 = vmatpush1.msra.mxu0 %v1415
        %1461 = vmatprep.subr.mxu0 0.0
        %1462 = vmatpush1.msra.mxu0 %v1416
        %1463 = vmatprep.subr.mxu0 0.0
        %1464 = vmatpush1.msra.mxu0 %v1417
        %1465 = vmatprep.subr.mxu0 0.0
        %1466 = vmatpush1.msra.mxu0 %v1418
        %1467 = vmatprep.subr.mxu0 0.0
        %1468 = vmatpush1.msra.mxu0 %v1419
        %1469 = vmatprep.subr.mxu0 0.0
        %1470 = vmatpush1.msra.mxu0 %v1420
        %1471 = vmatprep.subr.mxu0 0.0
        %1472 = vmatpush1.msra.mxu0 %v1421
        %1473 = vmatprep.subr.mxu0 0.0
        %1474 = vmatpush1.msra.mxu0 %v1422
        %1475 = vmatprep.subr.mxu0 0.0
        %1476 = vmatpush1.msra.mxu0 %v1423
        %1477 = vmatprep.subr.mxu0 0.0
        %1478 = vmatpush1.msra.mxu0 %v1424
        %1479 = vmatprep.subr.mxu0 0.0
        %1480 = vmatpush1.msra.mxu0 %v1425
        %1481 = vmatprep.subr.mxu0 0.0
        %1482 = vmatpush1.msra.mxu0 %v1426
        %1483 = vmatprep.subr.mxu0 0.0
        %1484 = vmatpush1.msra.mxu0 %v1427
        %1485 = vmatprep.subr.mxu0 0.0
        %1486 = vmatpush1.msra.mxu0 %v1428
        %1487 = vmatprep.subr.mxu0 0.0
        %1488 = vmatpush1.msra.mxu0 %v1429
        %1489 = vmatprep.subr.mxu0 0.0
        %1490 = vmatpush1.msra.mxu0 %v1430
        %1491 = vmatprep.subr.mxu0 0.0
        %1492 = vmatpush1.msra.mxu0 %v1431
        %1493 = vmatprep.subr.mxu0 0.0
        %1494 = vmatpush1.msra.mxu0 %v1432
        %1495 = vmatprep.subr.mxu0 0.0
        %1496 = vmatpush1.msra.mxu0 %v1433
        %1497 = vmatprep.subr.mxu0 0.0
        %1498 = vmatpush1.msra.mxu0 %v1434
        %1499 = vmatprep.mubr.f32.mxu0 %v1402
        %1500 = vmatmul.mubr.f32.gmra.mrb[0].mxu0 %v1401
        %v1501 = vpop.f32.mrb[0].mxu0
        %v1502 = vadd.f32 %v1318, %v1501
        %v1503 = vpop.f32.mrb[0].mxu0
        %1504 = vdwg.mxu0
        %v1505 = vsel %vm563, %v1502, 0.0
        %1506 = vadd.xlane.f32.xlu0 %v1505
        %v1507 = vpop.xlane.xlu0 %1506
        %v1508 = vmul.f32 %v1507, %v892
        %v1509 = vsub.f32 %v1502, %v1508
        %v1510 = vmul.f32 %v1509, %v1509
        %v1511 = vsel %vm563, %v1510, 0.0
        %1512 = vadd.xlane.f32.xlu0 %v1511
        %v1513 = vpop.xlane.xlu0 %1512
        %v1514 = vmul.f32 %v1513, %v892
        %v1515 = vadd.f32 %v1514, 1e-05
        %v1516 = vrsqrt.pop %v1515
        %v1517 = vmul.f32 %v1509, %v1516
        %1518 = vst.msk [vmem:[%s528] sm:$0xff] %vm563, %v1517
        %1519 = vst.msk [vmem:[%s535] sm:$0xff] %vm726, %v737
        %s1520 = scalar_lea.vmem %s535, 8 [#allocation6]
        %1521 = vst.msk [vmem:[%s1520] sm:$0xff] %vm726, %v1154
        %s1522 = sand.u32 %s339, 1
        %s1523 = scalar_lea.sflag [#allocation3], %s1522
        %s1524 = sand.u32 %s339, 1
        %s1525 = smul.addr %s1524, 8
        %s1526 = scalar_lea.vmem [#allocation5], %s1525
        %s1527 = sand.u32 %s365, 1
        %s1528 = scalar_lea.sflag [#allocation7], %s1527
        %s1529 = sand.u32 %s365, 1
        %s1530 = smul.addr %s1529, 16
        %s1531 = scalar_lea.vmem [#allocation6], %s1530
        // Predicated region
        $region77: #{tpu_custom_call.1} parent=71 // pred_check
          %p1532 = pneg %p349
        $region78: #{tpu_custom_call.1} parent=71 // pred_check_branch
          %1534 = sbr.rel (%p1532) target = $region80
        $region79: #{tpu_custom_call.1} parent=71 // pred_region
          %s1536 = ssub.s32 128, 128
          %1537 = vsyncadd %s1523, %s1536
          %s1538 = smul.addr %s33, 128
          %s1539 = scalar_lea.hbm %s13, %s1538
          %s1541 = sshll.u32 %s1526, 4
          %s1542 = int_to_ptr.vmem [resolvable:$true] %s1541
          %1544 = dma.vmem_to_hbm [thread:$0]  %s1542, 128, %s1539, %s1523
        $region80: #{tpu_custom_call.1} parent=71 // pred_fallthru
          _
        // Predicated region
        $region81: #{tpu_custom_call.1} parent=71 // pred_check
          %p1545 = pneg %p375
        $region82: #{tpu_custom_call.1} parent=71 // pred_check_branch
          %1547 = sbr.rel (%p1545) target = $region84
        $region83: #{tpu_custom_call.1} parent=71 // pred_region
          %s1549 = ssub.s32 256, 256
          %1550 = vsyncadd %s1528, %s1549
          %s1551 = smul.addr %s33, 2
          %s1552 = smul.addr %s1551, 128
          %s1553 = scalar_lea.hbm %s14, %s1552
          %s1554 = sshll.u32 %s1531, 4
          %s1555 = int_to_ptr.vmem [resolvable:$true] %s1554
          %1560 = dma.vmem_to_hbm [thread:$0]  %s1555, 256, %s1553, %s1528, 128, 128, 8
        $region84: #{tpu_custom_call.1} parent=71 // pred_fallthru
          _
      $region72: #{tpu_custom_call.1} parent=5 // pred_fallthru
        _
      %p1561 = scmp.le.s32.totalorder 2, %s28
      // Predicated region
      $region85: #{tpu_custom_call.1} parent=5 // pred_check
        %p1562 = pneg %p1561
      $region86: #{tpu_custom_call.1} parent=5 // pred_check_branch
        %1564 = sbr.rel (%p1562) target = $region88
      $region87: #{tpu_custom_call.1} parent=5 // pred_region
        %s1565 = ssub.s32 %s28, 2
        // Predicated region
        $region89: #{tpu_custom_call.1} parent=87 // pred_check
          %p1566 = pneg %p355
        $region90: #{tpu_custom_call.1} parent=87 // pred_check_branch
          %1568 = sbr.rel (%p1566) target = $region92
        $region91: #{tpu_custom_call.1} parent=87 // pred_region
          %s1569 = sand.u32 %s340, 1
          %s1570 = scalar_lea.sflag [#allocation3], %s1569
          %s1571 = sand.u32 %s340, 1
          %s1572 = smul.addr %s1571, 8
          %s1573 = scalar_lea.vmem [#allocation5], %s1572
          %1574 = dma.done %s1570, 128
        $region92: #{tpu_custom_call.1} parent=87 // pred_fallthru
          _
        // Predicated region
        $region93: #{tpu_custom_call.1} parent=87 // pred_check
          %p1575 = pneg %p381
        $region94: #{tpu_custom_call.1} parent=87 // pred_check_branch
          %1577 = sbr.rel (%p1575) target = $region96
        $region95: #{tpu_custom_call.1} parent=87 // pred_region
          %s1578 = sand.u32 %s366, 1
          %s1579 = scalar_lea.sflag [#allocation7], %s1578
          %s1580 = sand.u32 %s366, 1
          %s1581 = smul.addr %s1580, 16
          %s1582 = scalar_lea.vmem [#allocation6], %s1581
          %1583 = dma.done %s1579, 256
        $region96: #{tpu_custom_call.1} parent=87 // pred_fallthru
          _
      $region88: #{tpu_custom_call.1} parent=5 // pred_fallthru
        _
    $region6: #{tpu_custom_call.1} parent=1 // loop_footer
      %s32 = sadd.s32 1, %s28
    $region7: #{tpu_custom_call.1} parent=1 // loop_footer_branch
      %27 = sbr.rel target = $region3
    $region8: #{tpu_custom_call.1} parent=1 // loop_exit
      _
    %1584 = vsyncpa [#allocation3], 1
    %s1585 = scalar_lea.sflag [#allocation3], 1
    %1586 = vsyncpa %s1585, 1
    %1587 = vsyncpa [#allocation7], 1
    %s1588 = scalar_lea.sflag [#allocation7], 1
    %1589 = vsyncpa %s1588, 1
    %1590 = vsyncpa [#allocation4], 1
    %s1591 = scalar_lea.sflag [#allocation4], 1
    %1592 = vsyncpa %s1591, 1

</llo_original>
